<compile_context>
chip_gen: v7x
topology: tpu7x:2x2x1
jax: 0.10.0
libtpu: 0.0.40
codegen_flags: <defaults>
</compile_context>

<pallas_src>
import functools

import jax
import jax.numpy as jnp
from jax.experimental import pallas as pl
from jax.experimental.pallas import tpu as pltpu

LANE = 128
COMPUTE_DTYPE = jnp.bfloat16   # MXU operand dtype; set jnp.float32 for f32 parity.


# ----------------------------- fused Pallas kernel --------------------------

def _lenet5_kernel(x_ref, w1_ref, b1_ref, ph1_ref, w2_ref, b2_ref, ph2_ref,
                   w3_ref, b3_ref, w4_ref, b4_ref, w5_ref, b5_ref, o_ref,
                   *, act_dtype):
    """Whole LeNet5 forward for one 28x28 image.

    Activation layout everywhere: rows = H (sublanes), lanes = (W, C) packed
    W-major / channel-minor.  All weights were pre-arranged at init so that every
    step below is a plain 2-D MXU dot (f32 accumulate) + bias + tanh/relu.
    """
    f32 = jnp.float32
    cd = w1_ref.dtype                                  # MXU operand dtype

    x = x_ref[0]                                       # (28, 28), compute dtype

    # conv1 (5x5, 1->6) + bias + tanh.  Output (24, 24*6=144).
    y = jnp.zeros((24, 144), f32)
    for i in range(5):                                 # banded weight per kernel row
        y = y + jnp.dot(x[i:i + 24, :], w1_ref[i], preferred_element_type=f32)
    y1 = jnp.tanh((y + b1_ref[...]).astype(act_dtype)).astype(cd)        # (24, 144)

    # avgpool1: H direction here (tiny constant matmul); W direction is folded
    # into the prepared conv2 weights.
    q1 = jnp.dot(ph1_ref[...], y1, preferred_element_type=f32).astype(cd)  # (12, 144)

    # conv2 (5x5, 6->16) + bias + tanh.  Output (8, 8*16=128).
    y = jnp.zeros((8, 128), f32)
    for i in range(5):
        y = y + jnp.dot(q1[i:i + 8, :], w2_ref[i], preferred_element_type=f32)
    y2 = jnp.tanh((y + b2_ref[...]).astype(act_dtype)).astype(cd)        # (8, 128)

    # avgpool2: H direction here; W direction folded into the conv3 weights.
    q2 = jnp.dot(ph2_ref[...], y2, preferred_element_type=f32).astype(cd)  # (4, 128)

    # conv3 (4x4, 16->120) on the pooled 4x4 map == dense; one dot per kernel row.
    y = jnp.zeros((1, 128), f32)
    for h in range(4):
        y = y + jnp.dot(q2[h:h + 1, :], w3_ref[h], preferred_element_type=f32)
    y3 = jnp.tanh((y + b3_ref[...]).astype(act_dtype)).astype(cd)        # (1, 128)

    # fc1 (120->82) + relu.
    y = jnp.dot(y3, w4_ref[...], preferred_element_type=f32) + b4_ref[...]
    y4 = jnp.maximum(y.astype(act_dtype), 0).astype(cd)                  # (1, 128)

    # fc2 (82->10) + relu (the reference applies ReLU to the final logits too).
    y = jnp.dot(y4, w5_ref[...], preferred_element_type=f32) + b5_ref[...]
    o_ref[0] = jnp.maximum(y, 0.0).astype(o_ref.dtype)                   # (1, 128)


# ------------------------------- parameters ---------------------------------

def init_params(key):
    """PyTorch-default-style uniform(-1/sqrt(fan_in), +) init, PyTorch layouts."""
    ks = jax.random.split(key, 10)

    def u(k, shape, fan_in):
        bound = 1.0 / (fan_in ** 0.5)
        return jax.random.uniform(k, shape, jnp.float32, -bound, bound)

    return {
        "conv1_w": u(ks[0], (6, 1, 5, 5), 25), "conv1_b": u(ks[1], (6,), 25),
        "conv2_w": u(ks[2], (16, 6, 5, 5), 150), "conv2_b": u(ks[3], (16,), 150),
        "conv3_w": u(ks[4], (120, 16, 4, 4), 256), "conv3_b": u(ks[5], (120,), 256),
        "fc1_w": u(ks[6], (82, 120), 120), "fc1_b": u(ks[7], (82,), 120),
        "fc2_w": u(ks[8], (10, 82), 82), "fc2_b": u(ks[9], (10,), 82),
    }


def _pool_matrices():
    """H-pool (left-multiply) and W-pool (right-multiply) matrices for 2x2/s2."""
    ph1 = 0.5 * jnp.repeat(jnp.eye(12, dtype=jnp.float32), 2, axis=1)        # (12, 24)
    pw1 = 0.5 * jnp.kron(jnp.repeat(jnp.eye(12, dtype=jnp.float32), 2, axis=0),
                         jnp.eye(6, dtype=jnp.float32))                      # (144, 72)
    ph2 = 0.5 * jnp.repeat(jnp.eye(4, dtype=jnp.float32), 2, axis=1)         # (4, 8)
    pw2 = 0.5 * jnp.kron(jnp.repeat(jnp.eye(4, dtype=jnp.float32), 2, axis=0),
                         jnp.eye(16, dtype=jnp.float32))                     # (128, 64)
    return ph1, pw1, ph2, pw2


def _banded_conv1_weights(w):
    """(6,1,5,5) -> (5, 28, 144): W[i, wj, ow*6+co] = w[co,0,i,wj-ow] on the band."""
    wt = w.transpose(2, 3, 1, 0)                       # (kh, kw, cin=1, cout)
    W = jnp.zeros((5, 28, 24, 6), jnp.float32)
    ow = jnp.arange(24)
    for i in range(5):
        for j in range(5):
            W = W.at[i, ow + j, ow, :].set(jnp.broadcast_to(wt[i, j, 0], (24, 6)))
    return W.reshape(5, 28, 24 * 6)


def _banded_conv2_weights(w):
    """(16,6,5,5) -> (5, 72, 128): W[i, wj*6+ci, ow*16+co] = w[co,ci,i,wj-ow]."""
    wt = w.transpose(2, 3, 1, 0)                       # (kh, kw, cin, cout)
    W = jnp.zeros((5, 12, 6, 8, 16), jnp.float32)
    ow = jnp.arange(8)
    for i in range(5):
        for j in range(5):
            W = W.at[i, ow + j, :, ow, :].set(
                jnp.broadcast_to(wt[i, j][None], (8, 6, 16)))
    return W.reshape(5, 12 * 6, 8 * 16)


def _head_conv3_weights(w3, pw2):
    """(120,16,4,4) -> (4, 128, 128): per-row dense weights with W-pool folded in."""
    wt = w3.transpose(2, 3, 1, 0)                      # (kh, kw, cin, cout)
    blocks = []
    for h in range(4):
        w3_h = wt[h].reshape(4 * 16, 120)              # rows = (w*16 + ci)
        blocks.append(jnp.pad(pw2 @ w3_h, ((0, 0), (0, 8))))   # (128, 128)
    return jnp.stack(blocks, axis=0)


def _fc_weight(w):
    """(out, in) PyTorch Linear weight -> zero-padded (128, 128) matmul layout."""
    out_dim, in_dim = w.shape
    return jnp.pad(w.T, ((0, LANE - in_dim), (0, LANE - out_dim)))


def prepare_params(p, compute_dtype=COMPUTE_DTYPE):
    """One-time re-arrangement into the fused-kernel layout.

    * convs -> banded matrices (rows=H window, lanes=(W,C)), MXU dtype.
    * The W direction of each avg-pool is folded into the following layer's
      weights; the H direction is a tiny constant matrix passed to the kernel.
    * biases stay f32, pre-shaped to (1, N) rows, zero-padded (tanh(0)=relu(0)=0).
    """
    ph1, pw1, ph2, pw2 = _pool_matrices()
    w1 = _banded_conv1_weights(p["conv1_w"])                         # (5, 28, 144)
    w2 = _banded_conv2_weights(p["conv2_w"])                         # (5, 72, 128)
    w2f = jnp.einsum("am,imn->ian", pw1, w2)                         # (5, 144, 128)
    w3f = _head_conv3_weights(p["conv3_w"], pw2)                     # (4, 128, 128)
    cd = compute_dtype
    return {
        "w1": w1.astype(cd),
        "b1": jnp.tile(p["conv1_b"], 24).reshape(1, 144).astype(jnp.float32),
        "ph1": ph1.astype(cd),
        "w2": w2f.astype(cd),
        "b2": jnp.tile(p["conv2_b"], 8).reshape(1, 128).astype(jnp.float32),
        "ph2": ph2.astype(cd),
        "w3": w3f.astype(cd),
        "b3": jnp.pad(p["conv3_b"], (0, 8)).reshape(1, 128).astype(jnp.float32),
        "w4": _fc_weight(p["fc1_w"]).astype(cd),
        "b4": jnp.pad(p["fc1_b"], (0, 46)).reshape(1, 128).astype(jnp.float32),
        "w5": _fc_weight(p["fc2_w"]).astype(cd),
        "b5": jnp.pad(p["fc2_b"], (0, 118)).reshape(1, 128).astype(jnp.float32),
    }


# ------------------------------- forward ------------------------------------

def _pick_act_dtype(compute_dtype):
    """bf16 tanh/relu epilogue only on chips with a bf16 VPU/EUP (v6e, v7x)."""
    try:
        if jax.numpy.dtype if False else None:  # pragma: no cover
            pass
    except Exception:
        pass
    if getattr(compute_dtype, "name", str(compute_dtype)) != "bfloat16":
        return jnp.float32
    try:
        kind = jax.devices()[0].device_kind.lower()
    except Exception:
        return jnp.float32
    for old in ("v2", "v3", "v4", "v5"):
        if old in kind:
            return jnp.float32               # v5e and older: f32 VPU/EUP only
    return jnp.bfloat16


def lenet5_forward(p, x, *, act_dtype=None):
    """LeNet5 forward.  x: any array reshapeable to (-1, 1, 28, 28).  -> (B, 10)."""
    x = x.reshape(-1, 28, 28)                 # view(-1,1,28,28); C==1 so this is free
    B = x.shape[0]
    cd = p["w1"].dtype
    if act_dtype is None:
        act_dtype = _pick_act_dtype(cd)
    x = x.astype(cd)                          # halve the (tiny) input DMA

    flops_per_image = 2 * (5 * 24 * 28 * 144 + 12 * 24 * 144 + 5 * 8 * 144 * 128
                           + 4 * 8 * 128 + 4 * 128 * 128 + 2 * 128 * 128)
    trans_per_image = 24 * 144 + 8 * 128 + 128
    param_bytes = sum(int(v.size) * v.dtype.itemsize for v in p.values())
    cost = pl.CostEstimate(
        flops=B * flops_per_image,
        transcendentals=B * trans_per_image,
        bytes_accessed=int(x.size) * x.dtype.itemsize + param_bytes + B * LANE * 4,
    )

    def full(a):
        return pl.BlockSpec(a.shape, lambda *_: (0,) * a.ndim)

    out = pl.pallas_call(
        functools.partial(_lenet5_kernel, act_dtype=act_dtype),
        out_shape=jax.ShapeDtypeStruct((B, 1, LANE), jnp.float32),
        grid=(B,),
        in_specs=[
            pl.BlockSpec((1, 28, 28), lambda b: (b, 0, 0)),
            full(p["w1"]), full(p["b1"]), full(p["ph1"]),
            full(p["w2"]), full(p["b2"]), full(p["ph2"]),
            full(p["w3"]), full(p["b3"]),
            full(p["w4"]), full(p["b4"]),
            full(p["w5"]), full(p["b5"]),
        ],
        out_specs=pl.BlockSpec((1, 1, LANE), lambda b: (b, 0, 0)),
        compiler_params=pltpu.CompilerParams(dimension_semantics=("parallel",)),
        cost_estimate=cost,
    )(x, p["w1"], p["b1"], p["ph1"], p["w2"], p["b2"], p["ph2"],
      p["w3"], p["b3"], p["w4"], p["b4"], p["w5"], p["b5"])
    return out.reshape(B, LANE)[:, :10]       # slice the real logits only at the end


if __name__ == "__main__":
    key = jax.random.PRNGKey(0)
    k_params, k_x = jax.random.split(key)
    params = prepare_params(init_params(k_params))
    # LeNet5 hard-codes 28x28 single-channel inputs; small batch of 2.
    x = jax.random.normal(k_x, (2, 1, 28, 28), dtype=jnp.float32)

    out = jax.jit(lenet5_forward)(params, x)
    out = jax.block_until_ready(out)
    assert out.shape == (2, 10), out.shape
    assert bool(jnp.all(jnp.isfinite(out)))
    print("KERNEL_OK")
</pallas_src>

<mosaic_0001>
module attributes {stable_mosaic.version = 11 : i64} {
  func.func @_lenet5_kernel(%arg0: i32, %arg1: memref<1x28x28xbf16, #tpu.memory_space<vmem>>, %arg2: memref<5x28x144xbf16, #tpu.memory_space<vmem>>, %arg3: memref<1x144xf32, #tpu.memory_space<vmem>>, %arg4: memref<12x24xbf16, #tpu.memory_space<vmem>>, %arg5: memref<5x144x128xbf16, #tpu.memory_space<vmem>>, %arg6: memref<1x128xf32, #tpu.memory_space<vmem>>, %arg7: memref<4x8xbf16, #tpu.memory_space<vmem>>, %arg8: memref<4x128x128xbf16, #tpu.memory_space<vmem>>, %arg9: memref<1x128xf32, #tpu.memory_space<vmem>>, %arg10: memref<128x128xbf16, #tpu.memory_space<vmem>>, %arg11: memref<1x128xf32, #tpu.memory_space<vmem>>, %arg12: memref<128x128xbf16, #tpu.memory_space<vmem>>, %arg13: memref<1x128xf32, #tpu.memory_space<vmem>>, %arg14: memref<1x1x128xf32, #tpu.memory_space<vmem>>) attributes {dimension_semantics = [#tpu.dimension_semantics<parallel>], iteration_bounds = array<i64: 2>, scalar_prefetch = 0 : i64, scratch_operands = 0 : i64, tpu.core_type = #tpu.core_type<tc>, window_params = [{transform_indices = @transform_0, window_bounds = array<i64: 1, 28, 28>}, {pipeline_mode = #tpu.pipeline_mode<synchronous>, transform_indices = @transform_1, window_bounds = array<i64: 5, 28, 144>}, {pipeline_mode = #tpu.pipeline_mode<synchronous>, transform_indices = @transform_2, window_bounds = array<i64: 1, 144>}, {pipeline_mode = #tpu.pipeline_mode<synchronous>, transform_indices = @transform_3, window_bounds = array<i64: 12, 24>}, {pipeline_mode = #tpu.pipeline_mode<synchronous>, transform_indices = @transform_4, window_bounds = array<i64: 5, 144, 128>}, {pipeline_mode = #tpu.pipeline_mode<synchronous>, transform_indices = @transform_5, window_bounds = array<i64: 1, 128>}, {pipeline_mode = #tpu.pipeline_mode<synchronous>, transform_indices = @transform_6, window_bounds = array<i64: 4, 8>}, {pipeline_mode = #tpu.pipeline_mode<synchronous>, transform_indices = @transform_7, window_bounds = array<i64: 4, 128, 128>}, {pipeline_mode = #tpu.pipeline_mode<synchronous>, transform_indices = @transform_8, window_bounds = array<i64: 1, 128>}, {pipeline_mode = #tpu.pipeline_mode<synchronous>, transform_indices = @transform_9, window_bounds = array<i64: 128, 128>}, {pipeline_mode = #tpu.pipeline_mode<synchronous>, transform_indices = @transform_10, window_bounds = array<i64: 1, 128>}, {pipeline_mode = #tpu.pipeline_mode<synchronous>, transform_indices = @transform_11, window_bounds = array<i64: 128, 128>}, {pipeline_mode = #tpu.pipeline_mode<synchronous>, transform_indices = @transform_12, window_bounds = array<i64: 1, 128>}, {transform_indices = @transform_13, window_bounds = array<i64: 1, 1, 128>}]} {
    %c0 = arith.constant 0 : index
    %c0_0 = arith.constant 0 : index
    %c0_1 = arith.constant 0 : index
    %0 = vector.load %arg1[%c0, %c0_0, %c0_1] : memref<1x28x28xbf16, #tpu.memory_space<vmem>>, vector<1x28x28xbf16>
    %1 = vector.shape_cast %0 : vector<1x28x28xbf16> to vector<28x28xbf16>
    %cst = arith.constant 0.000000e+00 : f32
    %2 = vector.broadcast %cst : f32 to vector<24x144xf32>
    %3 = vector.extract_strided_slice %1 {offsets = [0, 0], sizes = [24, 28], strides = [1, 1]} : vector<28x28xbf16> to vector<24x28xbf16>
    %c0_2 = arith.constant 0 : index
    %c0_3 = arith.constant 0 : index
    %c0_4 = arith.constant 0 : index
    %4 = vector.load %arg2[%c0_2, %c0_3, %c0_4] : memref<5x28x144xbf16, #tpu.memory_space<vmem>>, vector<1x28x144xbf16>
    %5 = vector.shape_cast %4 : vector<1x28x144xbf16> to vector<28x144xbf16>
    %cst_5 = arith.constant dense<0.000000e+00> : vector<24x144xf32>
    %6 = tpu.matmul %3, %5, %cst_5 {dimension_numbers = #tpu.dot_dimension_numbers<[1], [0], [0], [1], [0, 0, 1, 1], [], []>} : vector<24x28xbf16>, vector<28x144xbf16>, vector<24x144xf32> -> vector<24x144xf32>
    %7 = arith.addf %2, %6 : vector<24x144xf32>
    %8 = vector.extract_strided_slice %1 {offsets = [1, 0], sizes = [24, 28], strides = [1, 1]} : vector<28x28xbf16> to vector<24x28xbf16>
    %c1 = arith.constant 1 : index
    %c0_6 = arith.constant 0 : index
    %c0_7 = arith.constant 0 : index
    %9 = vector.load %arg2[%c1, %c0_6, %c0_7] : memref<5x28x144xbf16, #tpu.memory_space<vmem>>, vector<1x28x144xbf16>
    %10 = vector.shape_cast %9 : vector<1x28x144xbf16> to vector<28x144xbf16>
    %cst_8 = arith.constant dense<0.000000e+00> : vector<24x144xf32>
    %11 = tpu.matmul %8, %10, %cst_8 {dimension_numbers = #tpu.dot_dimension_numbers<[1], [0], [0], [1], [0, 0, 1, 1], [], []>} : vector<24x28xbf16>, vector<28x144xbf16>, vector<24x144xf32> -> vector<24x144xf32>
    %12 = arith.addf %7, %11 : vector<24x144xf32>
    %13 = vector.extract_strided_slice %1 {offsets = [2, 0], sizes = [24, 28], strides = [1, 1]} : vector<28x28xbf16> to vector<24x28xbf16>
    %c2 = arith.constant 2 : index
    %c0_9 = arith.constant 0 : index
    %c0_10 = arith.constant 0 : index
    %14 = vector.load %arg2[%c2, %c0_9, %c0_10] : memref<5x28x144xbf16, #tpu.memory_space<vmem>>, vector<1x28x144xbf16>
    %15 = vector.shape_cast %14 : vector<1x28x144xbf16> to vector<28x144xbf16>
    %cst_11 = arith.constant dense<0.000000e+00> : vector<24x144xf32>
    %16 = tpu.matmul %13, %15, %cst_11 {dimension_numbers = #tpu.dot_dimension_numbers<[1], [0], [0], [1], [0, 0, 1, 1], [], []>} : vector<24x28xbf16>, vector<28x144xbf16>, vector<24x144xf32> -> vector<24x144xf32>
    %17 = arith.addf %12, %16 : vector<24x144xf32>
    %18 = vector.extract_strided_slice %1 {offsets = [3, 0], sizes = [24, 28], strides = [1, 1]} : vector<28x28xbf16> to vector<24x28xbf16>
    %c3 = arith.constant 3 : index
    %c0_12 = arith.constant 0 : index
    %c0_13 = arith.constant 0 : index
    %19 = vector.load %arg2[%c3, %c0_12, %c0_13] : memref<5x28x144xbf16, #tpu.memory_space<vmem>>, vector<1x28x144xbf16>
    %20 = vector.shape_cast %19 : vector<1x28x144xbf16> to vector<28x144xbf16>
    %cst_14 = arith.constant dense<0.000000e+00> : vector<24x144xf32>
    %21 = tpu.matmul %18, %20, %cst_14 {dimension_numbers = #tpu.dot_dimension_numbers<[1], [0], [0], [1], [0, 0, 1, 1], [], []>} : vector<24x28xbf16>, vector<28x144xbf16>, vector<24x144xf32> -> vector<24x144xf32>
    %22 = arith.addf %17, %21 : vector<24x144xf32>
    %23 = vector.extract_strided_slice %1 {offsets = [4, 0], sizes = [24, 28], strides = [1, 1]} : vector<28x28xbf16> to vector<24x28xbf16>
    %c4 = arith.constant 4 : index
    %c0_15 = arith.constant 0 : index
    %c0_16 = arith.constant 0 : index
    %24 = vector.load %arg2[%c4, %c0_15, %c0_16] : memref<5x28x144xbf16, #tpu.memory_space<vmem>>, vector<1x28x144xbf16>
    %25 = vector.shape_cast %24 : vector<1x28x144xbf16> to vector<28x144xbf16>
    %cst_17 = arith.constant dense<0.000000e+00> : vector<24x144xf32>
    %26 = tpu.matmul %23, %25, %cst_17 {dimension_numbers = #tpu.dot_dimension_numbers<[1], [0], [0], [1], [0, 0, 1, 1], [], []>} : vector<24x28xbf16>, vector<28x144xbf16>, vector<24x144xf32> -> vector<24x144xf32>
    %27 = arith.addf %22, %26 : vector<24x144xf32>
    %c0_18 = arith.constant 0 : index
    %c0_19 = arith.constant 0 : index
    %28 = vector.load %arg3[%c0_18, %c0_19] : memref<1x144xf32, #tpu.memory_space<vmem>>, vector<1x144xf32>
    %29 = vector.broadcast %28 : vector<1x144xf32> to vector<24x144xf32>
    %30 = arith.addf %27, %29 : vector<24x144xf32>
    %31 = arith.truncf %30 : vector<24x144xf32> to vector<24x144xbf16>
    %32 = math.tanh %31 : vector<24x144xbf16>
    %c0_20 = arith.constant 0 : index
    %c0_21 = arith.constant 0 : index
    %33 = vector.load %arg4[%c0_20, %c0_21] : memref<12x24xbf16, #tpu.memory_space<vmem>>, vector<12x24xbf16>
    %cst_22 = arith.constant dense<0.000000e+00> : vector<12x144xf32>
    %34 = tpu.matmul %33, %32, %cst_22 {dimension_numbers = #tpu.dot_dimension_numbers<[1], [0], [0], [1], [0, 0, 1, 1], [], []>} : vector<12x24xbf16>, vector<24x144xbf16>, vector<12x144xf32> -> vector<12x144xf32>
    %35 = arith.truncf %34 : vector<12x144xf32> to vector<12x144xbf16>
    %cst_23 = arith.constant 0.000000e+00 : f32
    %36 = vector.broadcast %cst_23 : f32 to vector<8x128xf32>
    %37 = vector.extract_strided_slice %35 {offsets = [0, 0], sizes = [8, 144], strides = [1, 1]} : vector<12x144xbf16> to vector<8x144xbf16>
    %c0_24 = arith.constant 0 : index
    %c0_25 = arith.constant 0 : index
    %c0_26 = arith.constant 0 : index
    %38 = vector.load %arg5[%c0_24, %c0_25, %c0_26] : memref<5x144x128xbf16, #tpu.memory_space<vmem>>, vector<1x144x128xbf16>
    %39 = vector.shape_cast %38 : vector<1x144x128xbf16> to vector<144x128xbf16>
    %cst_27 = arith.constant dense<0.000000e+00> : vector<8x128xf32>
    %40 = tpu.matmul %37, %39, %cst_27 {dimension_numbers = #tpu.dot_dimension_numbers<[1], [0], [0], [1], [0, 0, 1, 1], [], []>} : vector<8x144xbf16>, vector<144x128xbf16>, vector<8x128xf32> -> vector<8x128xf32>
    %41 = arith.addf %36, %40 : vector<8x128xf32>
    %42 = vector.extract_strided_slice %35 {offsets = [1, 0], sizes = [8, 144], strides = [1, 1]} : vector<12x144xbf16> to vector<8x144xbf16>
    %c1_28 = arith.constant 1 : index
    %c0_29 = arith.constant 0 : index
    %c0_30 = arith.constant 0 : index
    %43 = vector.load %arg5[%c1_28, %c0_29, %c0_30] : memref<5x144x128xbf16, #tpu.memory_space<vmem>>, vector<1x144x128xbf16>
    %44 = vector.shape_cast %43 : vector<1x144x128xbf16> to vector<144x128xbf16>
    %cst_31 = arith.constant dense<0.000000e+00> : vector<8x128xf32>
    %45 = tpu.matmul %42, %44, %cst_31 {dimension_numbers = #tpu.dot_dimension_numbers<[1], [0], [0], [1], [0, 0, 1, 1], [], []>} : vector<8x144xbf16>, vector<144x128xbf16>, vector<8x128xf32> -> vector<8x128xf32>
    %46 = arith.addf %41, %45 : vector<8x128xf32>
    %47 = vector.extract_strided_slice %35 {offsets = [2, 0], sizes = [8, 144], strides = [1, 1]} : vector<12x144xbf16> to vector<8x144xbf16>
    %c2_32 = arith.constant 2 : index
    %c0_33 = arith.constant 0 : index
    %c0_34 = arith.constant 0 : index
    %48 = vector.load %arg5[%c2_32, %c0_33, %c0_34] : memref<5x144x128xbf16, #tpu.memory_space<vmem>>, vector<1x144x128xbf16>
    %49 = vector.shape_cast %48 : vector<1x144x128xbf16> to vector<144x128xbf16>
    %cst_35 = arith.constant dense<0.000000e+00> : vector<8x128xf32>
    %50 = tpu.matmul %47, %49, %cst_35 {dimension_numbers = #tpu.dot_dimension_numbers<[1], [0], [0], [1], [0, 0, 1, 1], [], []>} : vector<8x144xbf16>, vector<144x128xbf16>, vector<8x128xf32> -> vector<8x128xf32>
    %51 = arith.addf %46, %50 : vector<8x128xf32>
    %52 = vector.extract_strided_slice %35 {offsets = [3, 0], sizes = [8, 144], strides = [1, 1]} : vector<12x144xbf16> to vector<8x144xbf16>
    %c3_36 = arith.constant 3 : index
    %c0_37 = arith.constant 0 : index
    %c0_38 = arith.constant 0 : index
    %53 = vector.load %arg5[%c3_36, %c0_37, %c0_38] : memref<5x144x128xbf16, #tpu.memory_space<vmem>>, vector<1x144x128xbf16>
    %54 = vector.shape_cast %53 : vector<1x144x128xbf16> to vector<144x128xbf16>
    %cst_39 = arith.constant dense<0.000000e+00> : vector<8x128xf32>
    %55 = tpu.matmul %52, %54, %cst_39 {dimension_numbers = #tpu.dot_dimension_numbers<[1], [0], [0], [1], [0, 0, 1, 1], [], []>} : vector<8x144xbf16>, vector<144x128xbf16>, vector<8x128xf32> -> vector<8x128xf32>
    %56 = arith.addf %51, %55 : vector<8x128xf32>
    %57 = vector.extract_strided_slice %35 {offsets = [4, 0], sizes = [8, 144], strides = [1, 1]} : vector<12x144xbf16> to vector<8x144xbf16>
    %c4_40 = arith.constant 4 : index
    %c0_41 = arith.constant 0 : index
    %c0_42 = arith.constant 0 : index
    %58 = vector.load %arg5[%c4_40, %c0_41, %c0_42] : memref<5x144x128xbf16, #tpu.memory_space<vmem>>, vector<1x144x128xbf16>
    %59 = vector.shape_cast %58 : vector<1x144x128xbf16> to vector<144x128xbf16>
    %cst_43 = arith.constant dense<0.000000e+00> : vector<8x128xf32>
    %60 = tpu.matmul %57, %59, %cst_43 {dimension_numbers = #tpu.dot_dimension_numbers<[1], [0], [0], [1], [0, 0, 1, 1], [], []>} : vector<8x144xbf16>, vector<144x128xbf16>, vector<8x128xf32> -> vector<8x128xf32>
    %61 = arith.addf %56, %60 : vector<8x128xf32>
    %c0_44 = arith.constant 0 : index
    %c0_45 = arith.constant 0 : index
    %62 = vector.load %arg6[%c0_44, %c0_45] : memref<1x128xf32, #tpu.memory_space<vmem>>, vector<1x128xf32>
    %63 = vector.broadcast %62 : vector<1x128xf32> to vector<8x128xf32>
    %64 = arith.addf %61, %63 : vector<8x128xf32>
    %65 = arith.truncf %64 : vector<8x128xf32> to vector<8x128xbf16>
    %66 = math.tanh %65 : vector<8x128xbf16>
    %c0_46 = arith.constant 0 : index
    %c0_47 = arith.constant 0 : index
    %67 = vector.load %arg7[%c0_46, %c0_47] : memref<4x8xbf16, #tpu.memory_space<vmem>>, vector<4x8xbf16>
    %cst_48 = arith.constant dense<0.000000e+00> : vector<4x128xf32>
    %68 = tpu.matmul %67, %66, %cst_48 {dimension_numbers = #tpu.dot_dimension_numbers<[1], [0], [0], [1], [0, 0, 1, 1], [], []>} : vector<4x8xbf16>, vector<8x128xbf16>, vector<4x128xf32> -> vector<4x128xf32>
    %69 = arith.truncf %68 : vector<4x128xf32> to vector<4x128xbf16>
    %cst_49 = arith.constant 0.000000e+00 : f32
    %70 = vector.broadcast %cst_49 : f32 to vector<1x128xf32>
    %71 = vector.extract_strided_slice %69 {offsets = [0, 0], sizes = [1, 128], strides = [1, 1]} : vector<4x128xbf16> to vector<1x128xbf16>
    %c0_50 = arith.constant 0 : index
    %c0_51 = arith.constant 0 : index
    %c0_52 = arith.constant 0 : index
    %72 = vector.load %arg8[%c0_50, %c0_51, %c0_52] : memref<4x128x128xbf16, #tpu.memory_space<vmem>>, vector<1x128x128xbf16>
    %73 = vector.shape_cast %72 : vector<1x128x128xbf16> to vector<128x128xbf16>
    %cst_53 = arith.constant dense<0.000000e+00> : vector<1x128xf32>
    %74 = tpu.matmul %71, %73, %cst_53 {dimension_numbers = #tpu.dot_dimension_numbers<[1], [0], [0], [1], [0, 0, 1, 1], [], []>} : vector<1x128xbf16>, vector<128x128xbf16>, vector<1x128xf32> -> vector<1x128xf32>
    %75 = arith.addf %70, %74 : vector<1x128xf32>
    %76 = vector.extract_strided_slice %69 {offsets = [1, 0], sizes = [1, 128], strides = [1, 1]} : vector<4x128xbf16> to vector<1x128xbf16>
    %c1_54 = arith.constant 1 : index
    %c0_55 = arith.constant 0 : index
    %c0_56 = arith.constant 0 : index
    %77 = vector.load %arg8[%c1_54, %c0_55, %c0_56] : memref<4x128x128xbf16, #tpu.memory_space<vmem>>, vector<1x128x128xbf16>
    %78 = vector.shape_cast %77 : vector<1x128x128xbf16> to vector<128x128xbf16>
    %cst_57 = arith.constant dense<0.000000e+00> : vector<1x128xf32>
    %79 = tpu.matmul %76, %78, %cst_57 {dimension_numbers = #tpu.dot_dimension_numbers<[1], [0], [0], [1], [0, 0, 1, 1], [], []>} : vector<1x128xbf16>, vector<128x128xbf16>, vector<1x128xf32> -> vector<1x128xf32>
    %80 = arith.addf %75, %79 : vector<1x128xf32>
    %81 = vector.extract_strided_slice %69 {offsets = [2, 0], sizes = [1, 128], strides = [1, 1]} : vector<4x128xbf16> to vector<1x128xbf16>
    %c2_58 = arith.constant 2 : index
    %c0_59 = arith.constant 0 : index
    %c0_60 = arith.constant 0 : index
    %82 = vector.load %arg8[%c2_58, %c0_59, %c0_60] : memref<4x128x128xbf16, #tpu.memory_space<vmem>>, vector<1x128x128xbf16>
    %83 = vector.shape_cast %82 : vector<1x128x128xbf16> to vector<128x128xbf16>
    %cst_61 = arith.constant dense<0.000000e+00> : vector<1x128xf32>
    %84 = tpu.matmul %81, %83, %cst_61 {dimension_numbers = #tpu.dot_dimension_numbers<[1], [0], [0], [1], [0, 0, 1, 1], [], []>} : vector<1x128xbf16>, vector<128x128xbf16>, vector<1x128xf32> -> vector<1x128xf32>
    %85 = arith.addf %80, %84 : vector<1x128xf32>
    %86 = vector.extract_strided_slice %69 {offsets = [3, 0], sizes = [1, 128], strides = [1, 1]} : vector<4x128xbf16> to vector<1x128xbf16>
    %c3_62 = arith.constant 3 : index
    %c0_63 = arith.constant 0 : index
    %c0_64 = arith.constant 0 : index
    %87 = vector.load %arg8[%c3_62, %c0_63, %c0_64] : memref<4x128x128xbf16, #tpu.memory_space<vmem>>, vector<1x128x128xbf16>
    %88 = vector.shape_cast %87 : vector<1x128x128xbf16> to vector<128x128xbf16>
    %cst_65 = arith.constant dense<0.000000e+00> : vector<1x128xf32>
    %89 = tpu.matmul %86, %88, %cst_65 {dimension_numbers = #tpu.dot_dimension_numbers<[1], [0], [0], [1], [0, 0, 1, 1], [], []>} : vector<1x128xbf16>, vector<128x128xbf16>, vector<1x128xf32> -> vector<1x128xf32>
    %90 = arith.addf %85, %89 : vector<1x128xf32>
    %c0_66 = arith.constant 0 : index
    %c0_67 = arith.constant 0 : index
    %91 = vector.load %arg9[%c0_66, %c0_67] : memref<1x128xf32, #tpu.memory_space<vmem>>, vector<1x128xf32>
    %92 = arith.addf %90, %91 : vector<1x128xf32>
    %93 = arith.truncf %92 : vector<1x128xf32> to vector<1x128xbf16>
    %94 = math.tanh %93 : vector<1x128xbf16>
    %c0_68 = arith.constant 0 : index
    %c0_69 = arith.constant 0 : index
    %95 = vector.load %arg10[%c0_68, %c0_69] : memref<128x128xbf16, #tpu.memory_space<vmem>>, vector<128x128xbf16>
    %cst_70 = arith.constant dense<0.000000e+00> : vector<1x128xf32>
    %96 = tpu.matmul %94, %95, %cst_70 {dimension_numbers = #tpu.dot_dimension_numbers<[1], [0], [0], [1], [0, 0, 1, 1], [], []>} : vector<1x128xbf16>, vector<128x128xbf16>, vector<1x128xf32> -> vector<1x128xf32>
    %c0_71 = arith.constant 0 : index
    %c0_72 = arith.constant 0 : index
    %97 = vector.load %arg11[%c0_71, %c0_72] : memref<1x128xf32, #tpu.memory_space<vmem>>, vector<1x128xf32>
    %98 = arith.addf %96, %97 : vector<1x128xf32>
    %99 = arith.truncf %98 : vector<1x128xf32> to vector<1x128xbf16>
    %cst_73 = arith.constant 0.000000e+00 : bf16
    %100 = vector.broadcast %cst_73 : bf16 to vector<1x128xbf16>
    %101 = arith.maximumf %99, %100 : vector<1x128xbf16>
    %c0_74 = arith.constant 0 : index
    %c0_75 = arith.constant 0 : index
    %102 = vector.load %arg12[%c0_74, %c0_75] : memref<128x128xbf16, #tpu.memory_space<vmem>>, vector<128x128xbf16>
    %cst_76 = arith.constant dense<0.000000e+00> : vector<1x128xf32>
    %103 = tpu.matmul %101, %102, %cst_76 {dimension_numbers = #tpu.dot_dimension_numbers<[1], [0], [0], [1], [0, 0, 1, 1], [], []>} : vector<1x128xbf16>, vector<128x128xbf16>, vector<1x128xf32> -> vector<1x128xf32>
    %c0_77 = arith.constant 0 : index
    %c0_78 = arith.constant 0 : index
    %104 = vector.load %arg13[%c0_77, %c0_78] : memref<1x128xf32, #tpu.memory_space<vmem>>, vector<1x128xf32>
    %105 = arith.addf %103, %104 : vector<1x128xf32>
    %cst_79 = arith.constant 0.000000e+00 : f32
    %106 = vector.broadcast %cst_79 : f32 to vector<1x128xf32>
    %107 = arith.maximumf %105, %106 : vector<1x128xf32>
    %c0_80 = arith.constant 0 : index
    %c0_81 = arith.constant 0 : index
    %c0_82 = arith.constant 0 : index
    %108 = vector.load %arg14[%c0_80, %c0_81, %c0_82] : memref<1x1x128xf32, #tpu.memory_space<vmem>>, vector<1x1x128xf32>
    %109 = vector.shape_cast %108 : vector<1x1x128xf32> to vector<1x128xf32>
    %110 = vector.shape_cast %107 : vector<1x128xf32> to vector<1x1x128xf32>
    tpu.vector_store %arg14[%c0_80, %c0_81, %c0_82], %110 {strides = array<i32>} : memref<1x1x128xf32, #tpu.memory_space<vmem>>, vector<1x1x128xf32>,
    return
  }
  func.func @transform_0(%arg0: i32) -> (i32, i32, i32) {
    %c0_i32 = arith.constant 0 : i32
    %c0_i32_0 = arith.constant 0 : i32
    %c0_i32_1 = arith.constant 0 : i32
    return %arg0, %c0_i32, %c0_i32_0 : i32, i32, i32
  }
  func.func @transform_1(%arg0: i32) -> (i32, i32, i32) {
    %c0_i32 = arith.constant 0 : i32
    %c0_i32_0 = arith.constant 0 : i32
    %c0_i32_1 = arith.constant 0 : i32
    %c0_i32_2 = arith.constant 0 : i32
    return %c0_i32, %c0_i32_0, %c0_i32_1 : i32, i32, i32
  }
  func.func @transform_2(%arg0: i32) -> (i32, i32) {
    %c0_i32 = arith.constant 0 : i32
    %c0_i32_0 = arith.constant 0 : i32
    %c0_i32_1 = arith.constant 0 : i32
    return %c0_i32, %c0_i32_0 : i32, i32
  }
  func.func @transform_3(%arg0: i32) -> (i32, i32) {
    %c0_i32 = arith.constant 0 : i32
    %c0_i32_0 = arith.constant 0 : i32
    %c0_i32_1 = arith.constant 0 : i32
    return %c0_i32, %c0_i32_0 : i32, i32
  }
  func.func @transform_4(%arg0: i32) -> (i32, i32, i32) {
    %c0_i32 = arith.constant 0 : i32
    %c0_i32_0 = arith.constant 0 : i32
    %c0_i32_1 = arith.constant 0 : i32
    %c0_i32_2 = arith.constant 0 : i32
    return %c0_i32, %c0_i32_0, %c0_i32_1 : i32, i32, i32
  }
  func.func @transform_5(%arg0: i32) -> (i32, i32) {
    %c0_i32 = arith.constant 0 : i32
    %c0_i32_0 = arith.constant 0 : i32
    %c0_i32_1 = arith.constant 0 : i32
    return %c0_i32, %c0_i32_0 : i32, i32
  }
  func.func @transform_6(%arg0: i32) -> (i32, i32) {
    %c0_i32 = arith.constant 0 : i32
    %c0_i32_0 = arith.constant 0 : i32
    %c0_i32_1 = arith.constant 0 : i32
    return %c0_i32, %c0_i32_0 : i32, i32
  }
  func.func @transform_7(%arg0: i32) -> (i32, i32, i32) {
    %c0_i32 = arith.constant 0 : i32
    %c0_i32_0 = arith.constant 0 : i32
    %c0_i32_1 = arith.constant 0 : i32
    %c0_i32_2 = arith.constant 0 : i32
    return %c0_i32, %c0_i32_0, %c0_i32_1 : i32, i32, i32
  }
  func.func @transform_8(%arg0: i32) -> (i32, i32) {
    %c0_i32 = arith.constant 0 : i32
    %c0_i32_0 = arith.constant 0 : i32
    %c0_i32_1 = arith.constant 0 : i32
    return %c0_i32, %c0_i32_0 : i32, i32
  }
  func.func @transform_9(%arg0: i32) -> (i32, i32) {
    %c0_i32 = arith.constant 0 : i32
    %c0_i32_0 = arith.constant 0 : i32
    %c0_i32_1 = arith.constant 0 : i32
    return %c0_i32, %c0_i32_0 : i32, i32
  }
  func.func @transform_10(%arg0: i32) -> (i32, i32) {
    %c0_i32 = arith.constant 0 : i32
    %c0_i32_0 = arith.constant 0 : i32
    %c0_i32_1 = arith.constant 0 : i32
    return %c0_i32, %c0_i32_0 : i32, i32
  }
  func.func @transform_11(%arg0: i32) -> (i32, i32) {
    %c0_i32 = arith.constant 0 : i32
    %c0_i32_0 = arith.constant 0 : i32
    %c0_i32_1 = arith.constant 0 : i32
    return %c0_i32, %c0_i32_0 : i32, i32
  }
  func.func @transform_12(%arg0: i32) -> (i32, i32) {
    %c0_i32 = arith.constant 0 : i32
    %c0_i32_0 = arith.constant 0 : i32
    %c0_i32_1 = arith.constant 0 : i32
    return %c0_i32, %c0_i32_0 : i32, i32
  }
  func.func @transform_13(%arg0: i32) -> (i32, i32, i32) {
    %c0_i32 = arith.constant 0 : i32
    %c0_i32_0 = arith.constant 0 : i32
    %c0_i32_1 = arith.constant 0 : i32
    return %arg0, %c0_i32, %c0_i32_0 : i32, i32, i32
  }
}

</mosaic_0001>

<llo_original>
// kernel: lenet5_forward.1
$region0: #{lenet5_forward.1}
  #allocation0 [shape = 'u32[]', space=smem, size = 0x4, offset = 0x4, fixed_abs, tag = 'smem constant byte address 0x4 - core index']
  #allocation1 [shape = 'u32[144,128]{1,0:T(1,128)}', space=vmem, size = 0x12000, scoped, tag = 'internal scratch']
  %s0 = inlined_call_operand.vmem [shape: bf16[2,28,28], index: 0, kind: input, shape index: {}]
  %s1 = inlined_call_operand.hbm [shape: bf16[5,28,144], index: 1, kind: input, shape index: {}]
  %s2 = inlined_call_operand.hbm [shape: f32[1,144], index: 2, kind: input, shape index: {}]
  %s3 = inlined_call_operand.hbm [shape: bf16[12,24], index: 3, kind: input, shape index: {}]
  %s4 = inlined_call_operand.hbm [shape: bf16[5,144,128], index: 4, kind: input, shape index: {}]
  %s5 = inlined_call_operand.vmem [shape: f32[1,128], index: 5, kind: input, shape index: {}]
  %s6 = inlined_call_operand.hbm [shape: bf16[4,8], index: 6, kind: input, shape index: {}]
  %s7 = inlined_call_operand.hbm [shape: bf16[4,128,128], index: 7, kind: input, shape index: {}]
  %s8 = inlined_call_operand.hbm [shape: f32[1,128], index: 8, kind: input, shape index: {}]
  %s9 = inlined_call_operand.vmem [shape: bf16[128,128], index: 9, kind: input, shape index: {}]
  %s10 = inlined_call_operand.hbm [shape: f32[1,128], index: 10, kind: input, shape index: {}]
  %s11 = inlined_call_operand.vmem [shape: bf16[128,128], index: 11, kind: input, shape index: {}]
  %s12 = inlined_call_operand.hbm [shape: f32[1,128], index: 12, kind: input, shape index: {}]
  %s13 = inlined_call_operand.hbm [shape: f32[2,1,128], index: 13, kind: output, shape index: {}]
  %s14 = sld [smem:[#allocation0]]
  $region121: #{lenet5_forward.1} parent=0
    _
  %s16 = ssub.s32 1, %s14
  %s17 = scalar_select 0, %s16, %s14
  $region1: #{lenet5_forward.1} parent=0
    #allocation2 [shape = 'u8[81920]{0}', space=vmem, size = 0x14000, scoped, tag = 'input window, operand 1, single buffered']
    #allocation3 [shape = 's32[2]{0}', space=sflag, size = 0x8, scoped, tag = 'scoped memory for lenet5_forward.1']
    #allocation4 [shape = 's32[2]{0}', space=sflag, size = 0x8, scoped, tag = 'scoped memory for lenet5_forward.1']
    #allocation5 [shape = 'u8[1024]{0}', space=vmem, size = 0x400, scoped, tag = 'input window, operand 2, single buffered']
    #allocation6 [shape = 's32[1]{0}', space=sflag, size = 0x4, scoped, tag = 'scoped memory for lenet5_forward.1']
    #allocation7 [shape = 'u8[4096]{0}', space=vmem, size = 0x1000, scoped, tag = 'input window, operand 3, single buffered']
    #allocation8 [shape = 'u8[184320]{0}', space=vmem, size = 0x2d000, scoped, tag = 'input window, operand 4, single buffered']
    #allocation9 [shape = 's32[1]{0}', space=sflag, size = 0x4, scoped, tag = 'scoped memory for lenet5_forward.1']
    #allocation10 [shape = 'u8[1024]{0}', space=vmem, size = 0x400, scoped, tag = 'input window, operand 6, single buffered']
    #allocation11 [shape = 'u8[131072]{0}', space=vmem, size = 0x20000, scoped, tag = 'input window, operand 7, single buffered']
    #allocation12 [shape = 's32[1]{0}', space=sflag, size = 0x4, scoped, tag = 'scoped memory for lenet5_forward.1']
    #allocation13 [shape = 'u8[512]{0}', space=vmem, size = 0x400, scoped, tag = 'input window, operand 8, single buffered']
    #allocation14 [shape = 'u8[512]{0}', space=vmem, size = 0x400, scoped, tag = 'input window, operand 10, single buffered']
    #allocation15 [shape = 's32[1]{0}', space=sflag, size = 0x4, scoped, tag = 'scoped memory for lenet5_forward.1']
    #allocation16 [shape = 'u8[512]{0}', space=vmem, size = 0x400, scoped, tag = 'input window, operand 12, single buffered']
    #allocation17 [shape = 'u8[1024]{0}', space=vmem, size = 0x400, scoped, tag = 'output window, operand 0']
    %18 = vsyncpa [#allocation3], 0
    %19 = vsyncpa [#allocation6], 0
    %20 = vsyncpa [#allocation9], 0
    %21 = vsyncpa [#allocation12], 0
    %22 = vsyncpa [#allocation15], 0
    %23 = vsyncpa [#allocation4], 0
    %s24 = scalar_lea.sflag [#allocation4], 1
    %25 = vsyncpa %s24, 0
    loop: start=0, step=1, limit=4
    $region2: #{lenet5_forward.1} parent=1 // loop_pre_header
      _
    $region3: #{lenet5_forward.1} parent=1 // loop_header
      %s27 = sphi 0, %s31
      %p28 = scmp.ge.s32.totalorder %s27, 4
      %s37 = sphi 0, %s39
      %s40 = sphi 0, %s37
      %s41 = sphi 0, %s40
      %s57 = sphi 0, %s41
      %s61 = sphi 0, %s61
      %s63 = sphi 0, %s61
      %s64 = sphi 0, %s63
      %s78 = sphi 0, %s64
      %s82 = sphi 0, %s82
      %s84 = sphi 0, %s82
      %s85 = sphi 0, %s84
      %s99 = sphi 0, %s85
      %s103 = sphi 0, %s103
      %s105 = sphi 0, %s103
      %s106 = sphi 0, %s105
      %s120 = sphi 0, %s106
      %s124 = sphi 0, %s124
      %s126 = sphi 0, %s124
      %s127 = sphi 0, %s126
      %s141 = sphi 0, %s127
      %s145 = sphi 0, %s145
      %s147 = sphi 0, %s145
      %s148 = sphi 0, %s147
      %s162 = sphi 0, %s148
      %s166 = sphi 0, %s166
      %s168 = sphi 0, %s166
      %s169 = sphi 0, %s168
      %s183 = sphi 0, %s169
      %s187 = sphi 0, %s187
      %s189 = sphi 0, %s187
      %s190 = sphi 0, %s189
      %s204 = sphi 0, %s190
      %s208 = sphi 0, %s208
      %s210 = sphi 0, %s208
      %s211 = sphi 0, %s210
      %s225 = sphi 0, %s211
      %s229 = sphi 0, %s229
      %s231 = sphi 0, %s229
      %s232 = sphi 0, %s231
      %s246 = sphi 0, %s232
      %s250 = sphi 0, %s250
      %s252 = sphi 0, %s250
      %s253 = sphi 0, %s252
      %s267 = sphi 0, %s253
      %s271 = sphi 0, %s271
      %s273 = sphi 0, %s271
      %s274 = sphi 0, %s273
      %s288 = sphi 0, %s274
      %s292 = sphi 0, %s292
      %s294 = sphi 0, %s292
      %s295 = sphi 0, %s294
      %s309 = sphi 0, %s295
      %s315 = sphi 0, %s317
      %s318 = sphi 0, %s315
      %s319 = sphi 0, %s318
      %s335 = sphi 0, %s319
    $region4: #{lenet5_forward.1} parent=1 // loop_header_branch
      %30 = sbr.rel (%p28) target = $region8
    $region5: #{lenet5_forward.1} parent=1 // loop_body
      %s32 = ssub.s32 %s27, 1
      %s33 = ssub.s32 %s27, 2
      %s34 = sadd.s32 %s27, 1
      %s35 = ssub.s32 %s27, %s34
      %p36 = scmp.eq.s32.totalorder %s35, 0
      %s38 = sadd.s32 %s37, 1
      %s39 = scalar_select %p36, %s37, %s38
      %p42 = pneg %p36
      %p43 = scmp.eq.s32.totalorder %s27, 1
      %p44 = por %p42, %p43
      %p45 = scmp.ne.s32.totalorder %s37, %s40
      %p46 = scmp.eq.s32.totalorder %s27, 0
      %p47 = por %p45, %p46
      %p48 = scmp.ne.s32.totalorder %s37, %s40
      %p49 = scmp.eq.s32.totalorder %s32, 1
      %p50 = por %p48, %p49
      %p51 = scmp.ne.s32.totalorder %s40, %s41
      %p52 = scmp.eq.s32.totalorder %s32, 0
      %p53 = por %p51, %p52
      %p54 = scmp.ne.s32.totalorder %s40, %s41
      %p55 = scmp.eq.s32.totalorder %s33, 1
      %p56 = por %p54, %p55
      %p58 = scmp.ne.s32.totalorder %s41, %s57
      %p59 = scmp.eq.s32.totalorder %s33, 0
      %p60 = por %p58, %p59
      %s62 = sadd.s32 %s61, 1
      %p65 = scmp.eq.s32.totalorder %s27, 1
      %p66 = scmp.ne.s32.totalorder %s61, %s63
      %p67 = scmp.eq.s32.totalorder %s27, 0
      %p68 = por %p66, %p67
      %p69 = scmp.ne.s32.totalorder %s61, %s63
      %p70 = scmp.eq.s32.totalorder %s32, 1
      %p71 = por %p69, %p70
      %p72 = scmp.ne.s32.totalorder %s63, %s64
      %p73 = scmp.eq.s32.totalorder %s32, 0
      %p74 = por %p72, %p73
      %p75 = scmp.ne.s32.totalorder %s63, %s64
      %p76 = scmp.eq.s32.totalorder %s33, 1
      %p77 = por %p75, %p76
      %p79 = scmp.ne.s32.totalorder %s64, %s78
      %p80 = scmp.eq.s32.totalorder %s33, 0
      %p81 = por %p79, %p80
      %s83 = sadd.s32 %s82, 1
      %p86 = scmp.eq.s32.totalorder %s27, 1
      %p87 = scmp.ne.s32.totalorder %s82, %s84
      %p88 = scmp.eq.s32.totalorder %s27, 0
      %p89 = por %p87, %p88
      %p90 = scmp.ne.s32.totalorder %s82, %s84
      %p91 = scmp.eq.s32.totalorder %s32, 1
      %p92 = por %p90, %p91
      %p93 = scmp.ne.s32.totalorder %s84, %s85
      %p94 = scmp.eq.s32.totalorder %s32, 0
      %p95 = por %p93, %p94
      %p96 = scmp.ne.s32.totalorder %s84, %s85
      %p97 = scmp.eq.s32.totalorder %s33, 1
      %p98 = por %p96, %p97
      %p100 = scmp.ne.s32.totalorder %s85, %s99
      %p101 = scmp.eq.s32.totalorder %s33, 0
      %p102 = por %p100, %p101
      %s104 = sadd.s32 %s103, 1
      %p107 = scmp.eq.s32.totalorder %s27, 1
      %p108 = scmp.ne.s32.totalorder %s103, %s105
      %p109 = scmp.eq.s32.totalorder %s27, 0
      %p110 = por %p108, %p109
      %p111 = scmp.ne.s32.totalorder %s103, %s105
      %p112 = scmp.eq.s32.totalorder %s32, 1
      %p113 = por %p111, %p112
      %p114 = scmp.ne.s32.totalorder %s105, %s106
      %p115 = scmp.eq.s32.totalorder %s32, 0
      %p116 = por %p114, %p115
      %p117 = scmp.ne.s32.totalorder %s105, %s106
      %p118 = scmp.eq.s32.totalorder %s33, 1
      %p119 = por %p117, %p118
      %p121 = scmp.ne.s32.totalorder %s106, %s120
      %p122 = scmp.eq.s32.totalorder %s33, 0
      %p123 = por %p121, %p122
      %s125 = sadd.s32 %s124, 1
      %p128 = scmp.eq.s32.totalorder %s27, 1
      %p129 = scmp.ne.s32.totalorder %s124, %s126
      %p130 = scmp.eq.s32.totalorder %s27, 0
      %p131 = por %p129, %p130
      %p132 = scmp.ne.s32.totalorder %s124, %s126
      %p133 = scmp.eq.s32.totalorder %s32, 1
      %p134 = por %p132, %p133
      %p135 = scmp.ne.s32.totalorder %s126, %s127
      %p136 = scmp.eq.s32.totalorder %s32, 0
      %p137 = por %p135, %p136
      %p138 = scmp.ne.s32.totalorder %s126, %s127
      %p139 = scmp.eq.s32.totalorder %s33, 1
      %p140 = por %p138, %p139
      %p142 = scmp.ne.s32.totalorder %s127, %s141
      %p143 = scmp.eq.s32.totalorder %s33, 0
      %p144 = por %p142, %p143
      %s146 = sadd.s32 %s145, 1
      %p149 = scmp.eq.s32.totalorder %s27, 1
      %p150 = scmp.ne.s32.totalorder %s145, %s147
      %p151 = scmp.eq.s32.totalorder %s27, 0
      %p152 = por %p150, %p151
      %p153 = scmp.ne.s32.totalorder %s145, %s147
      %p154 = scmp.eq.s32.totalorder %s32, 1
      %p155 = por %p153, %p154
      %p156 = scmp.ne.s32.totalorder %s147, %s148
      %p157 = scmp.eq.s32.totalorder %s32, 0
      %p158 = por %p156, %p157
      %p159 = scmp.ne.s32.totalorder %s147, %s148
      %p160 = scmp.eq.s32.totalorder %s33, 1
      %p161 = por %p159, %p160
      %p163 = scmp.ne.s32.totalorder %s148, %s162
      %p164 = scmp.eq.s32.totalorder %s33, 0
      %p165 = por %p163, %p164
      %s167 = sadd.s32 %s166, 1
      %p170 = scmp.eq.s32.totalorder %s27, 1
      %p171 = scmp.ne.s32.totalorder %s166, %s168
      %p172 = scmp.eq.s32.totalorder %s27, 0
      %p173 = por %p171, %p172
      %p174 = scmp.ne.s32.totalorder %s166, %s168
      %p175 = scmp.eq.s32.totalorder %s32, 1
      %p176 = por %p174, %p175
      %p177 = scmp.ne.s32.totalorder %s168, %s169
      %p178 = scmp.eq.s32.totalorder %s32, 0
      %p179 = por %p177, %p178
      %p180 = scmp.ne.s32.totalorder %s168, %s169
      %p181 = scmp.eq.s32.totalorder %s33, 1
      %p182 = por %p180, %p181
      %p184 = scmp.ne.s32.totalorder %s169, %s183
      %p185 = scmp.eq.s32.totalorder %s33, 0
      %p186 = por %p184, %p185
      %s188 = sadd.s32 %s187, 1
      %p191 = scmp.eq.s32.totalorder %s27, 1
      %p192 = scmp.ne.s32.totalorder %s187, %s189
      %p193 = scmp.eq.s32.totalorder %s27, 0
      %p194 = por %p192, %p193
      %p195 = scmp.ne.s32.totalorder %s187, %s189
      %p196 = scmp.eq.s32.totalorder %s32, 1
      %p197 = por %p195, %p196
      %p198 = scmp.ne.s32.totalorder %s189, %s190
      %p199 = scmp.eq.s32.totalorder %s32, 0
      %p200 = por %p198, %p199
      %p201 = scmp.ne.s32.totalorder %s189, %s190
      %p202 = scmp.eq.s32.totalorder %s33, 1
      %p203 = por %p201, %p202
      %p205 = scmp.ne.s32.totalorder %s190, %s204
      %p206 = scmp.eq.s32.totalorder %s33, 0
      %p207 = por %p205, %p206
      %s209 = sadd.s32 %s208, 1
      %p212 = scmp.eq.s32.totalorder %s27, 1
      %p213 = scmp.ne.s32.totalorder %s208, %s210
      %p214 = scmp.eq.s32.totalorder %s27, 0
      %p215 = por %p213, %p214
      %p216 = scmp.ne.s32.totalorder %s208, %s210
      %p217 = scmp.eq.s32.totalorder %s32, 1
      %p218 = por %p216, %p217
      %p219 = scmp.ne.s32.totalorder %s210, %s211
      %p220 = scmp.eq.s32.totalorder %s32, 0
      %p221 = por %p219, %p220
      %p222 = scmp.ne.s32.totalorder %s210, %s211
      %p223 = scmp.eq.s32.totalorder %s33, 1
      %p224 = por %p222, %p223
      %p226 = scmp.ne.s32.totalorder %s211, %s225
      %p227 = scmp.eq.s32.totalorder %s33, 0
      %p228 = por %p226, %p227
      %s230 = sadd.s32 %s229, 1
      %p233 = scmp.eq.s32.totalorder %s27, 1
      %p234 = scmp.ne.s32.totalorder %s229, %s231
      %p235 = scmp.eq.s32.totalorder %s27, 0
      %p236 = por %p234, %p235
      %p237 = scmp.ne.s32.totalorder %s229, %s231
      %p238 = scmp.eq.s32.totalorder %s32, 1
      %p239 = por %p237, %p238
      %p240 = scmp.ne.s32.totalorder %s231, %s232
      %p241 = scmp.eq.s32.totalorder %s32, 0
      %p242 = por %p240, %p241
      %p243 = scmp.ne.s32.totalorder %s231, %s232
      %p244 = scmp.eq.s32.totalorder %s33, 1
      %p245 = por %p243, %p244
      %p247 = scmp.ne.s32.totalorder %s232, %s246
      %p248 = scmp.eq.s32.totalorder %s33, 0
      %p249 = por %p247, %p248
      %s251 = sadd.s32 %s250, 1
      %p254 = scmp.eq.s32.totalorder %s27, 1
      %p255 = scmp.ne.s32.totalorder %s250, %s252
      %p256 = scmp.eq.s32.totalorder %s27, 0
      %p257 = por %p255, %p256
      %p258 = scmp.ne.s32.totalorder %s250, %s252
      %p259 = scmp.eq.s32.totalorder %s32, 1
      %p260 = por %p258, %p259
      %p261 = scmp.ne.s32.totalorder %s252, %s253
      %p262 = scmp.eq.s32.totalorder %s32, 0
      %p263 = por %p261, %p262
      %p264 = scmp.ne.s32.totalorder %s252, %s253
      %p265 = scmp.eq.s32.totalorder %s33, 1
      %p266 = por %p264, %p265
      %p268 = scmp.ne.s32.totalorder %s253, %s267
      %p269 = scmp.eq.s32.totalorder %s33, 0
      %p270 = por %p268, %p269
      %s272 = sadd.s32 %s271, 1
      %p275 = scmp.eq.s32.totalorder %s27, 1
      %p276 = scmp.ne.s32.totalorder %s271, %s273
      %p277 = scmp.eq.s32.totalorder %s27, 0
      %p278 = por %p276, %p277
      %p279 = scmp.ne.s32.totalorder %s271, %s273
      %p280 = scmp.eq.s32.totalorder %s32, 1
      %p281 = por %p279, %p280
      %p282 = scmp.ne.s32.totalorder %s273, %s274
      %p283 = scmp.eq.s32.totalorder %s32, 0
      %p284 = por %p282, %p283
      %p285 = scmp.ne.s32.totalorder %s273, %s274
      %p286 = scmp.eq.s32.totalorder %s33, 1
      %p287 = por %p285, %p286
      %p289 = scmp.ne.s32.totalorder %s274, %s288
      %p290 = scmp.eq.s32.totalorder %s33, 0
      %p291 = por %p289, %p290
      %s293 = sadd.s32 %s292, 1
      %p296 = scmp.eq.s32.totalorder %s27, 1
      %p297 = scmp.ne.s32.totalorder %s292, %s294
      %p298 = scmp.eq.s32.totalorder %s27, 0
      %p299 = por %p297, %p298
      %p300 = scmp.ne.s32.totalorder %s292, %s294
      %p301 = scmp.eq.s32.totalorder %s32, 1
      %p302 = por %p300, %p301
      %p303 = scmp.ne.s32.totalorder %s294, %s295
      %p304 = scmp.eq.s32.totalorder %s32, 0
      %p305 = por %p303, %p304
      %p306 = scmp.ne.s32.totalorder %s294, %s295
      %p307 = scmp.eq.s32.totalorder %s33, 1
      %p308 = por %p306, %p307
      %p310 = scmp.ne.s32.totalorder %s295, %s309
      %p311 = scmp.eq.s32.totalorder %s33, 0
      %p312 = por %p310, %p311
      %s313 = ssub.s32 %s27, %s34
      %p314 = scmp.eq.s32.totalorder %s313, 0
      %s316 = sadd.s32 %s315, 1
      %s317 = scalar_select %p314, %s315, %s316
      %p320 = pneg %p314
      %p321 = scmp.eq.s32.totalorder %s27, 1
      %p322 = por %p320, %p321
      %p323 = scmp.ne.s32.totalorder %s315, %s318
      %p324 = scmp.eq.s32.totalorder %s27, 0
      %p325 = por %p323, %p324
      %p326 = scmp.ne.s32.totalorder %s315, %s318
      %p327 = scmp.eq.s32.totalorder %s32, 1
      %p328 = por %p326, %p327
      %p329 = scmp.ne.s32.totalorder %s318, %s319
      %p330 = scmp.eq.s32.totalorder %s32, 0
      %p331 = por %p329, %p330
      %p332 = scmp.ne.s32.totalorder %s318, %s319
      %p333 = scmp.eq.s32.totalorder %s33, 1
      %p334 = por %p332, %p333
      %p336 = scmp.ne.s32.totalorder %s319, %s335
      %p337 = scmp.eq.s32.totalorder %s33, 0
      %p338 = por %p336, %p337
      %p339 = scmp.le.s32.totalorder 1, %s27
      %p340 = scmp.lt.s32.totalorder %s27, 3
      %p341 = pnand %p339, %p340
      %p342 = pneg %p341
      // Predicated region
      $region9: #{lenet5_forward.1} parent=5 // pred_check
        _
      $region10: #{lenet5_forward.1} parent=5 // pred_check_branch
        %344 = sbr.rel (%p341) target = $region12
      $region11: #{lenet5_forward.1} parent=5 // pred_region
        %s345 = ssub.s32 %s27, 1
        // Predicated region
        $region13: #{lenet5_forward.1} parent=11 // pred_check
          %p346 = pneg %p74
        $region14: #{lenet5_forward.1} parent=11 // pred_check_branch
          %348 = sbr.rel (%p346) target = $region16
        $region15: #{lenet5_forward.1} parent=11 // pred_region
          %s350 = ssub.s32 2560, 2560
          %351 = vsyncadd [#allocation3], %s350
          %s352 = sshll.u32 [#allocation2], 4
          %s353 = int_to_ptr.vmem [resolvable:$true] %s352
          %358 = dma.hbm_to_vmem [thread:$0]  %s1, 2560, %s353, [#allocation3], 128, 128, 8
        $region16: #{lenet5_forward.1} parent=11 // pred_fallthru
          _
        // Predicated region
        $region17: #{lenet5_forward.1} parent=11 // pred_check
          %p359 = pneg %p95
        $region18: #{lenet5_forward.1} parent=11 // pred_check_branch
          %361 = sbr.rel (%p359) target = $region20
        $region19: #{lenet5_forward.1} parent=11 // pred_region
          %s363 = ssub.s32 32, 32
          %364 = vsyncadd [#allocation6], %s363
          %s366 = sshll.u32 [#allocation5], 4
          %s367 = int_to_ptr.vmem [resolvable:$true] %s366
          %369 = dma.hbm_to_vmem [thread:$0]  %s2, 32, %s367, [#allocation6]
        $region20: #{lenet5_forward.1} parent=11 // pred_fallthru
          _
        // Predicated region
        $region21: #{lenet5_forward.1} parent=11 // pred_check
          %p370 = pneg %p116
        $region22: #{lenet5_forward.1} parent=11 // pred_check_branch
          %372 = sbr.rel (%p370) target = $region24
        $region23: #{lenet5_forward.1} parent=11 // pred_region
          %s374 = ssub.s32 128, 128
          %375 = vsyncadd [#allocation6], %s374
          %s376 = sshll.u32 [#allocation7], 4
          %s377 = int_to_ptr.vmem [resolvable:$true] %s376
          %382 = dma.hbm_to_vmem [thread:$0]  %s3, 128, %s377, [#allocation6], 64, 64, 4
        $region24: #{lenet5_forward.1} parent=11 // pred_fallthru
          _
        // Predicated region
        $region25: #{lenet5_forward.1} parent=11 // pred_check
          %p383 = pneg %p137
        $region26: #{lenet5_forward.1} parent=11 // pred_check_branch
          %385 = sbr.rel (%p383) target = $region28
        $region27: #{lenet5_forward.1} parent=11 // pred_region
          %s387 = ssub.s32 5760, 5760
          %388 = vsyncadd [#allocation9], %s387
          %s389 = sshll.u32 [#allocation8], 4
          %s390 = int_to_ptr.vmem [resolvable:$true] %s389
          %395 = dma.hbm_to_vmem [thread:$0]  %s4, 5760, %s390, [#allocation9], 64, 64, 4
        $region28: #{lenet5_forward.1} parent=11 // pred_fallthru
          _
        // Predicated region
        $region29: #{lenet5_forward.1} parent=11 // pred_check
          %p396 = pneg %p158
        $region30: #{lenet5_forward.1} parent=11 // pred_check_branch
          %398 = sbr.rel (%p396) target = $region32
        $region31: #{lenet5_forward.1} parent=11 // pred_region
          _
        $region32: #{lenet5_forward.1} parent=11 // pred_fallthru
          _
        // Predicated region
        $region33: #{lenet5_forward.1} parent=11 // pred_check
          %p399 = pneg %p179
        $region34: #{lenet5_forward.1} parent=11 // pred_check_branch
          %401 = sbr.rel (%p399) target = $region36
        $region35: #{lenet5_forward.1} parent=11 // pred_region
          %s403 = ssub.s32 32, 32
          %404 = vsyncadd [#allocation9], %s403
          %s406 = sshll.u32 [#allocation10], 4
          %s407 = int_to_ptr.vmem [resolvable:$true] %s406
          %409 = dma.hbm_to_vmem [thread:$0]  %s6, 32, %s407, [#allocation9]
        $region36: #{lenet5_forward.1} parent=11 // pred_fallthru
          _
        // Predicated region
        $region37: #{lenet5_forward.1} parent=11 // pred_check
          %p410 = pneg %p200
        $region38: #{lenet5_forward.1} parent=11 // pred_check_branch
          %412 = sbr.rel (%p410) target = $region40
        $region39: #{lenet5_forward.1} parent=11 // pred_region
          %s414 = ssub.s32 4096, 4096
          %415 = vsyncadd [#allocation12], %s414
          %s416 = sshll.u32 [#allocation11], 4
          %s417 = int_to_ptr.vmem [resolvable:$true] %s416
          %422 = dma.hbm_to_vmem [thread:$0]  %s7, 4096, %s417, [#allocation12], 64, 64, 4
        $region40: #{lenet5_forward.1} parent=11 // pred_fallthru
          _
        // Predicated region
        $region41: #{lenet5_forward.1} parent=11 // pred_check
          %p423 = pneg %p221
        $region42: #{lenet5_forward.1} parent=11 // pred_check_branch
          %425 = sbr.rel (%p423) target = $region44
        $region43: #{lenet5_forward.1} parent=11 // pred_region
          %s427 = ssub.s32 16, 16
          %428 = vsyncadd [#allocation12], %s427
          %s430 = sshll.u32 [#allocation13], 4
          %s431 = int_to_ptr.vmem [resolvable:$true] %s430
          %433 = dma.hbm_to_vmem [thread:$0]  %s8, 16, %s431, [#allocation12]
        $region44: #{lenet5_forward.1} parent=11 // pred_fallthru
          _
        // Predicated region
        $region45: #{lenet5_forward.1} parent=11 // pred_check
          %p434 = pneg %p242
        $region46: #{lenet5_forward.1} parent=11 // pred_check_branch
          %436 = sbr.rel (%p434) target = $region48
        $region47: #{lenet5_forward.1} parent=11 // pred_region
          _
        $region48: #{lenet5_forward.1} parent=11 // pred_fallthru
          _
        // Predicated region
        $region49: #{lenet5_forward.1} parent=11 // pred_check
          %p437 = pneg %p263
        $region50: #{lenet5_forward.1} parent=11 // pred_check_branch
          %439 = sbr.rel (%p437) target = $region52
        $region51: #{lenet5_forward.1} parent=11 // pred_region
          %s441 = ssub.s32 16, 16
          %442 = vsyncadd [#allocation15], %s441
          %s444 = sshll.u32 [#allocation14], 4
          %s445 = int_to_ptr.vmem [resolvable:$true] %s444
          %447 = dma.hbm_to_vmem [thread:$0]  %s10, 16, %s445, [#allocation15]
        $region52: #{lenet5_forward.1} parent=11 // pred_fallthru
          _
        // Predicated region
        $region53: #{lenet5_forward.1} parent=11 // pred_check
          %p448 = pneg %p284
        $region54: #{lenet5_forward.1} parent=11 // pred_check_branch
          %450 = sbr.rel (%p448) target = $region56
        $region55: #{lenet5_forward.1} parent=11 // pred_region
          _
        $region56: #{lenet5_forward.1} parent=11 // pred_fallthru
          _
        // Predicated region
        $region57: #{lenet5_forward.1} parent=11 // pred_check
          %p451 = pneg %p305
        $region58: #{lenet5_forward.1} parent=11 // pred_check_branch
          %453 = sbr.rel (%p451) target = $region60
        $region59: #{lenet5_forward.1} parent=11 // pred_region
          %s455 = ssub.s32 16, 16
          %456 = vsyncadd [#allocation15], %s455
          %s458 = sshll.u32 [#allocation16], 4
          %s459 = int_to_ptr.vmem [resolvable:$true] %s458
          %461 = dma.hbm_to_vmem [thread:$0]  %s12, 16, %s459, [#allocation15]
        $region60: #{lenet5_forward.1} parent=11 // pred_fallthru
          _
      $region12: #{lenet5_forward.1} parent=5 // pred_fallthru
        _
      %p462 = scmp.lt.s32.totalorder %s27, 2
      // Predicated region
      $region61: #{lenet5_forward.1} parent=5 // pred_check
        %p463 = pneg %p462
      $region62: #{lenet5_forward.1} parent=5 // pred_check_branch
        %465 = sbr.rel (%p463) target = $region64
      $region63: #{lenet5_forward.1} parent=5 // pred_region
        // Predicated region
        $region65: #{lenet5_forward.1} parent=63 // pred_check
          %p466 = pneg %p47
        $region66: #{lenet5_forward.1} parent=63 // pred_check_branch
          %468 = sbr.rel (%p466) target = $region68
        $region67: #{lenet5_forward.1} parent=63 // pred_region
          %p469 = scmp.lt.s32.totalorder %s27, 1
          %s470 = scalar_select %p469, %s27, 1
          %s471 = smul.addr %s470, 4
          %s472 = smul.addr %s471, 4
          %s473 = scalar_lea.vmem %s0, %s472
        $region68: #{lenet5_forward.1} parent=63 // pred_fallthru
          _
      $region64: #{lenet5_forward.1} parent=5 // pred_fallthru
        _
      %p474 = scmp.le.s32.totalorder 1, %s27
      %p475 = scmp.lt.s32.totalorder %s27, 3
      %p476 = pnand %p474, %p475
      %p477 = pneg %p476
      // Predicated region
      $region69: #{lenet5_forward.1} parent=5 // pred_check
        _
      $region70: #{lenet5_forward.1} parent=5 // pred_check_branch
        %479 = sbr.rel (%p476) target = $region72
      $region71: #{lenet5_forward.1} parent=5 // pred_region
        %s480 = ssub.s32 %s27, 1
        // Predicated region
        $region73: #{lenet5_forward.1} parent=71 // pred_check
          %p481 = pneg %p74
        $region74: #{lenet5_forward.1} parent=71 // pred_check_branch
          %483 = sbr.rel (%p481) target = $region76
        $region75: #{lenet5_forward.1} parent=71 // pred_region
          %484 = dma.done [#allocation3], 2560
        $region76: #{lenet5_forward.1} parent=71 // pred_fallthru
          _
        // Predicated region
        $region77: #{lenet5_forward.1} parent=71 // pred_check
          %p485 = pneg %p95
        $region78: #{lenet5_forward.1} parent=71 // pred_check_branch
          %487 = sbr.rel (%p485) target = $region80
        $region79: #{lenet5_forward.1} parent=71 // pred_region
          %488 = dma.done [#allocation6], 32
        $region80: #{lenet5_forward.1} parent=71 // pred_fallthru
          _
        // Predicated region
        $region81: #{lenet5_forward.1} parent=71 // pred_check
          %p489 = pneg %p116
        $region82: #{lenet5_forward.1} parent=71 // pred_check_branch
          %491 = sbr.rel (%p489) target = $region84
        $region83: #{lenet5_forward.1} parent=71 // pred_region
          %492 = dma.done [#allocation6], 128
        $region84: #{lenet5_forward.1} parent=71 // pred_fallthru
          _
        // Predicated region
        $region85: #{lenet5_forward.1} parent=71 // pred_check
          %p493 = pneg %p137
        $region86: #{lenet5_forward.1} parent=71 // pred_check_branch
          %495 = sbr.rel (%p493) target = $region88
        $region87: #{lenet5_forward.1} parent=71 // pred_region
          %496 = dma.done [#allocation9], 5760
        $region88: #{lenet5_forward.1} parent=71 // pred_fallthru
          _
        // Predicated region
        $region89: #{lenet5_forward.1} parent=71 // pred_check
          %p497 = pneg %p179
        $region90: #{lenet5_forward.1} parent=71 // pred_check_branch
          %499 = sbr.rel (%p497) target = $region92
        $region91: #{lenet5_forward.1} parent=71 // pred_region
          %500 = dma.done [#allocation9], 32
        $region92: #{lenet5_forward.1} parent=71 // pred_fallthru
          _
        // Predicated region
        $region93: #{lenet5_forward.1} parent=71 // pred_check
          %p501 = pneg %p200
        $region94: #{lenet5_forward.1} parent=71 // pred_check_branch
          %503 = sbr.rel (%p501) target = $region96
        $region95: #{lenet5_forward.1} parent=71 // pred_region
          %504 = dma.done [#allocation12], 4096
        $region96: #{lenet5_forward.1} parent=71 // pred_fallthru
          _
        // Predicated region
        $region97: #{lenet5_forward.1} parent=71 // pred_check
          %p505 = pneg %p221
        $region98: #{lenet5_forward.1} parent=71 // pred_check_branch
          %507 = sbr.rel (%p505) target = $region100
        $region99: #{lenet5_forward.1} parent=71 // pred_region
          %508 = dma.done [#allocation12], 16
        $region100: #{lenet5_forward.1} parent=71 // pred_fallthru
          _
        // Predicated region
        $region101: #{lenet5_forward.1} parent=71 // pred_check
          %p509 = pneg %p263
        $region102: #{lenet5_forward.1} parent=71 // pred_check_branch
          %511 = sbr.rel (%p509) target = $region104
        $region103: #{lenet5_forward.1} parent=71 // pred_region
          %512 = dma.done [#allocation15], 16
        $region104: #{lenet5_forward.1} parent=71 // pred_fallthru
          _
        // Predicated region
        $region105: #{lenet5_forward.1} parent=71 // pred_check
          %p513 = pneg %p305
        $region106: #{lenet5_forward.1} parent=71 // pred_check_branch
          %515 = sbr.rel (%p513) target = $region108
        $region107: #{lenet5_forward.1} parent=71 // pred_region
          %516 = dma.done [#allocation15], 16
        $region108: #{lenet5_forward.1} parent=71 // pred_fallthru
          _
        %p517 = scmp.lt.s32.totalorder %s32, 1
        %s518 = scalar_select %p517, %s32, 1
        %s519 = smul.addr %s518, 4
        %s520 = smul.addr %s519, 4
        %s521 = scalar_lea.vmem %s0, %s520
        %p522 = pneg %p53
        %p523 = pneg %p50
        %p524 = pneg %p74
        %p525 = pneg %p71
        %p526 = pneg %p95
        %p527 = pneg %p92
        %p528 = pneg %p116
        %p529 = pneg %p113
        %p530 = pneg %p137
        %p531 = pneg %p134
        %p532 = pneg %p158
        %p533 = pneg %p155
        %p534 = pneg %p179
        %p535 = pneg %p176
        %p536 = pneg %p200
        %p537 = pneg %p197
        %p538 = pneg %p221
        %p539 = pneg %p218
        %p540 = pneg %p242
        %p541 = pneg %p239
        %p542 = pneg %p263
        %p543 = pneg %p260
        %p544 = pneg %p284
        %p545 = pneg %p281
        %p546 = pneg %p305
        %p547 = pneg %p302
        %p548 = pneg %p331
        %p549 = pneg %p328
        %s550 = sand.u32 %s318, 1
        %s551 = scalar_lea.sflag [#allocation4], %s550
        %s552 = sand.u32 %s318, 1
        %s553 = scalar_lea.vmem [#allocation17], %s552
        %p554 = scmp.lt.s32.totalorder %s32, 1
        %s555 = scalar_select %p554, %s32, 1
        %s556 = smul.addr %s555, 4
        %s557 = smul.addr %s556, 4
        %s558 = scalar_lea.vmem %s0, %s557
        %v560 = vld [vmem:[%s558] sm:$0xf]
        %v561 = vld [vmem:[%s558 + $0x4] sm:$0xf]
        %v562 = vld [vmem:[%s558 + $0x8] sm:$0xf]
        %v563 = vld [vmem:[%s558 + $0xc] sm:$0x3]
        %v564 = vld [vmem:[#allocation2] sm:$0xff]
        %v565 = vld [vmem:[#allocation2 + $0x8] sm:$0xff]
        %v566 = vld [vmem:[#allocation2 + $0x10] sm:$0xff]
        %v567 = vld [vmem:[#allocation2 + $0x18] sm:$0x33]
        %s568 = scalar_lea.vmem [#allocation2], 32
        %v569 = vld [vmem:[%s568] sm:$0xff]
        %v570 = vld [vmem:[%s568 + $0x8] sm:$0xff]
        %v571 = vld [vmem:[%s568 + $0x10] sm:$0xff]
        %v572 = vld [vmem:[%s568 + $0x18] sm:$0x33]
        %v577 = vunpack.c.l.b16 %v560
        %v578 = vunpack.c.l.b16 %v561
        %v579 = vunpack.c.l.b16 %v562
        %v580 = vunpack.c.l.b16 %v563
        %v581 = vpack.c.b16 %v578, %v577
        %v582 = vpack.c.b16 %v580, %v579
        %vm583 = vsmask.f32 7424
        %v585 = vshrl.u32 %v581, 16
        %v587 = vshll.u32 %v581, 16
        %v589 = vrot.slane %v587, 1
        %v590 = vor.u32 %v585, %v589
        %v592 = vshll.u32 %v582, 16
        %v594 = vrot.slane %v592, 1
        %v595 = vsel %vm583, %v590, %v594
        %v596 = vshrl.u32 %v582, 16
        %v598 = vor.u32 %v596, %v594
        %v603 = vunpack.c.l.b16 %v569
        %v604 = vunpack.c.h.b16 %v569
        %v605 = vunpack.c.l.b16 %v570
        %v606 = vunpack.c.h.b16 %v570
        %v607 = vunpack.c.l.b16 %v571
        %v608 = vunpack.c.h.b16 %v571
        %v609 = vunpack.c.l.b16 %v572
        %v610 = vunpack.c.h.b16 %v572
        %v611 = vpack.c.b16 %v605, %v603
        %v612 = vpack.c.b16 %v606, %v604
        %v613 = vpack.c.b16 %v609, %v607
        %v614 = vpack.c.b16 %v610, %v608
        %vm617 = vcmask 228352
        %v619 = vsel %vm617, %v595, 0
        %v622 = vsel %vm617, %v598, 0
        %vm624 = vcmask 1045504
        %v626 = vsel %vm624, %v613, 0
        %v629 = vsel %vm624, %v614, 0
        %631 = vmatprep.subr.bf16.mxu0 %v612
        %632 = vmatpush1.bf16.msra.mxu0 %v611
        %633 = vmatprep.subr.bf16.mxu0 %v629
        %634 = vmatpush1.bf16.msra.mxu0 %v626
        %635 = vmatprep.subr.bf16.mxu0 0
        %636 = vmatpush1.bf16.msra.mxu0 0
        %637 = vmatprep.subr.bf16.mxu0 0
        %638 = vmatpush1.bf16.msra.mxu0 0
        %639 = vmatprep.subr.bf16.mxu0 0
        %640 = vmatpush1.bf16.msra.mxu0 0
        %641 = vmatprep.subr.bf16.mxu0 0
        %642 = vmatpush1.bf16.msra.mxu0 0
        %643 = vmatprep.subr.bf16.mxu0 0
        %644 = vmatpush1.bf16.msra.mxu0 0
        %645 = vmatprep.subr.bf16.mxu0 0
        %646 = vmatpush1.bf16.msra.mxu0 0
        %647 = vmatprep.subr.bf16.mxu0 0
        %648 = vmatpush1.bf16.msra.mxu0 0
        %649 = vmatprep.subr.bf16.mxu0 0
        %650 = vmatpush1.bf16.msra.mxu0 0
        %651 = vmatprep.subr.bf16.mxu0 0
        %652 = vmatpush1.bf16.msra.mxu0 0
        %653 = vmatprep.subr.bf16.mxu0 0
        %654 = vmatpush1.bf16.msra.mxu0 0
        %655 = vmatprep.subr.bf16.mxu0 0
        %656 = vmatpush1.bf16.msra.mxu0 0
        %657 = vmatprep.subr.bf16.mxu0 0
        %658 = vmatpush1.bf16.msra.mxu0 0
        %659 = vmatprep.subr.bf16.mxu0 0
        %660 = vmatpush1.bf16.msra.mxu0 0
        %661 = vmatprep.subr.bf16.mxu0 0
        %662 = vmatpush1.bf16.msra.mxu0 0
        %663 = vmatprep.mubr.bf16.mxu0 0
        %664 = vmatmul.mubr.bf16.gmra.mrb[0].mxu0 %v619
        %v665 = vpop.f32.mrb[0].mxu0
        %v666 = vadd.f32 0.0, %v665
        %v667 = vpop.f32.mrb[0].mxu0
        %v668 = vadd.f32 0.0, %v667
        %v669 = vpop.f32.mrb[0].mxu0
        %v670 = vadd.f32 0.0, %v669
        %v671 = vpop.f32.mrb[0].mxu0
        %v672 = vadd.f32 0.0, %v671
        %673 = vmatprep.mubr.bf16.mxu0 0
        %674 = vmatmul.mubr.bf16.gmra.mrb[0].mxu0 %v622
        %v675 = vpop.f32.mrb[0].mxu0
        %v676 = vadd.f32 0.0, %v675
        %v677 = vpop.f32.mrb[0].mxu0
        %v678 = vadd.f32 0.0, %v677
        %v679 = vpop.f32.mrb[0].mxu0
        %v680 = vpop.f32.mrb[0].mxu0
        %681 = vdwg.mxu0
        %v682 = vpack.c.b16 %v579, %v579
        %v687 = vunpack.c.l.b16 %v564
        %v688 = vunpack.c.h.b16 %v564
        %v689 = vunpack.c.l.b16 %v565
        %v690 = vunpack.c.h.b16 %v565
        %v691 = vunpack.c.l.b16 %v566
        %v692 = vunpack.c.h.b16 %v566
        %v693 = vunpack.c.l.b16 %v567
        %v694 = vunpack.c.h.b16 %v567
        %v695 = vpack.c.b16 %v689, %v687
        %v696 = vpack.c.b16 %v690, %v688
        %v697 = vpack.c.b16 %v693, %v691
        %v698 = vpack.c.b16 %v694, %v692
        %v701 = vsel %vm617, %v581, 0
        %v704 = vsel %vm617, %v682, 0
        %v707 = vsel %vm624, %v697, 0
        %v710 = vsel %vm624, %v698, 0
        %712 = vmatprep.subr.bf16.mxu0 %v696
        %713 = vmatpush1.bf16.msra.mxu0 %v695
        %714 = vmatprep.subr.bf16.mxu0 %v710
        %715 = vmatpush1.bf16.msra.mxu0 %v707
        %716 = vmatprep.subr.bf16.mxu0 0
        %717 = vmatpush1.bf16.msra.mxu0 0
        %718 = vmatprep.subr.bf16.mxu0 0
        %719 = vmatpush1.bf16.msra.mxu0 0
        %720 = vmatprep.subr.bf16.mxu0 0
        %721 = vmatpush1.bf16.msra.mxu0 0
        %722 = vmatprep.subr.bf16.mxu0 0
        %723 = vmatpush1.bf16.msra.mxu0 0
        %724 = vmatprep.subr.bf16.mxu0 0
        %725 = vmatpush1.bf16.msra.mxu0 0
        %726 = vmatprep.subr.bf16.mxu0 0
        %727 = vmatpush1.bf16.msra.mxu0 0
        %728 = vmatprep.subr.bf16.mxu0 0
        %729 = vmatpush1.bf16.msra.mxu0 0
        %730 = vmatprep.subr.bf16.mxu0 0
        %731 = vmatpush1.bf16.msra.mxu0 0
        %732 = vmatprep.subr.bf16.mxu0 0
        %733 = vmatpush1.bf16.msra.mxu0 0
        %734 = vmatprep.subr.bf16.mxu0 0
        %735 = vmatpush1.bf16.msra.mxu0 0
        %736 = vmatprep.subr.bf16.mxu0 0
        %737 = vmatpush1.bf16.msra.mxu0 0
        %738 = vmatprep.subr.bf16.mxu0 0
        %739 = vmatpush1.bf16.msra.mxu0 0
        %740 = vmatprep.subr.bf16.mxu0 0
        %741 = vmatpush1.bf16.msra.mxu0 0
        %742 = vmatprep.subr.bf16.mxu0 0
        %743 = vmatpush1.bf16.msra.mxu0 0
        %744 = vmatprep.mubr.bf16.mxu0 0
        %745 = vmatmul.mubr.bf16.gmra.mrb[0].mxu0 %v701
        %v746 = vpop.f32.mrb[0].mxu0
        %v747 = vadd.f32 %v666, %v746
        %v748 = vpop.f32.mrb[0].mxu0
        %v749 = vadd.f32 %v668, %v748
        %v750 = vpop.f32.mrb[0].mxu0
        %v751 = vadd.f32 %v670, %v750
        %v752 = vpop.f32.mrb[0].mxu0
        %v753 = vadd.f32 %v672, %v752
        %754 = vmatprep.mubr.bf16.mxu0 0
        %755 = vmatmul.mubr.bf16.gmra.mrb[0].mxu0 %v704
        %v756 = vpop.f32.mrb[0].mxu0
        %v757 = vadd.f32 %v676, %v756
        %v758 = vpop.f32.mrb[0].mxu0
        %v759 = vadd.f32 %v678, %v758
        %v760 = vpop.f32.mrb[0].mxu0
        %v761 = vpop.f32.mrb[0].mxu0
        %762 = vdwg.mxu0
        %s763 = scalar_lea.vmem [#allocation2], 64
        %v764 = vld [vmem:[%s763] sm:$0xff]
        %v765 = vld [vmem:[%s763 + $0x8] sm:$0xff]
        %v766 = vld [vmem:[%s763 + $0x10] sm:$0xff]
        %v767 = vld [vmem:[%s763 + $0x18] sm:$0x33]
        %vm768 = vcmask 1046528
        %v769 = vrot.slane %v581, 1
        %v770 = vrot.slane %v582, 1
        %v771 = vsel %vm768, %v769, %v770
        %v776 = vunpack.c.l.b16 %v764
        %v777 = vunpack.c.h.b16 %v764
        %v778 = vunpack.c.l.b16 %v765
        %v779 = vunpack.c.h.b16 %v765
        %v780 = vunpack.c.l.b16 %v766
        %v781 = vunpack.c.h.b16 %v766
        %v782 = vunpack.c.l.b16 %v767
        %v783 = vunpack.c.h.b16 %v767
        %v784 = vpack.c.b16 %v778, %v776
        %v785 = vpack.c.b16 %v779, %v777
        %v786 = vpack.c.b16 %v782, %v780
        %v787 = vpack.c.b16 %v783, %v781
        %v791 = vsel %vm617, %v771, 0
        %v794 = vsel %vm617, %v770, 0
        %v797 = vsel %vm624, %v786, 0
        %v800 = vsel %vm624, %v787, 0
        %802 = vmatprep.subr.bf16.mxu0 %v785
        %803 = vmatpush1.bf16.msra.mxu0 %v784
        %804 = vmatprep.subr.bf16.mxu0 %v800
        %805 = vmatpush1.bf16.msra.mxu0 %v797
        %806 = vmatprep.subr.bf16.mxu0 0
        %807 = vmatpush1.bf16.msra.mxu0 0
        %808 = vmatprep.subr.bf16.mxu0 0
        %809 = vmatpush1.bf16.msra.mxu0 0
        %810 = vmatprep.subr.bf16.mxu0 0
        %811 = vmatpush1.bf16.msra.mxu0 0
        %812 = vmatprep.subr.bf16.mxu0 0
        %813 = vmatpush1.bf16.msra.mxu0 0
        %814 = vmatprep.subr.bf16.mxu0 0
        %815 = vmatpush1.bf16.msra.mxu0 0
        %816 = vmatprep.subr.bf16.mxu0 0
        %817 = vmatpush1.bf16.msra.mxu0 0
        %818 = vmatprep.subr.bf16.mxu0 0
        %819 = vmatpush1.bf16.msra.mxu0 0
        %820 = vmatprep.subr.bf16.mxu0 0
        %821 = vmatpush1.bf16.msra.mxu0 0
        %822 = vmatprep.subr.bf16.mxu0 0
        %823 = vmatpush1.bf16.msra.mxu0 0
        %824 = vmatprep.subr.bf16.mxu0 0
        %825 = vmatpush1.bf16.msra.mxu0 0
        %826 = vmatprep.subr.bf16.mxu0 0
        %827 = vmatpush1.bf16.msra.mxu0 0
        %828 = vmatprep.subr.bf16.mxu0 0
        %829 = vmatpush1.bf16.msra.mxu0 0
        %830 = vmatprep.subr.bf16.mxu0 0
        %831 = vmatpush1.bf16.msra.mxu0 0
        %832 = vmatprep.subr.bf16.mxu0 0
        %833 = vmatpush1.bf16.msra.mxu0 0
        %834 = vmatprep.mubr.bf16.mxu0 0
        %835 = vmatmul.mubr.bf16.gmra.mrb[0].mxu0 %v791
        %v836 = vpop.f32.mrb[0].mxu0
        %v837 = vadd.f32 0.0, %v836
        %v838 = vpop.f32.mrb[0].mxu0
        %v839 = vadd.f32 0.0, %v838
        %v840 = vpop.f32.mrb[0].mxu0
        %v841 = vadd.f32 0.0, %v840
        %v842 = vpop.f32.mrb[0].mxu0
        %v843 = vadd.f32 0.0, %v842
        %844 = vmatprep.mubr.bf16.mxu0 0
        %845 = vmatmul.mubr.bf16.gmra.mrb[0].mxu0 %v794
        %v846 = vpop.f32.mrb[0].mxu0
        %v847 = vadd.f32 0.0, %v846
        %v848 = vpop.f32.mrb[0].mxu0
        %v849 = vadd.f32 0.0, %v848
        %v850 = vpop.f32.mrb[0].mxu0
        %v851 = vpop.f32.mrb[0].mxu0
        %852 = vdwg.mxu0
        %v853 = vadd.f32 %v747, %v837
        %v854 = vadd.f32 %v749, %v839
        %v855 = vadd.f32 %v751, %v841
        %v856 = vadd.f32 %v753, %v843
        %v857 = vadd.f32 %v757, %v847
        %v858 = vadd.f32 %v759, %v849
        %s859 = scalar_lea.vmem [#allocation2], 96
        %v860 = vld [vmem:[%s859] sm:$0xff]
        %v861 = vld [vmem:[%s859 + $0x8] sm:$0xff]
        %v862 = vld [vmem:[%s859 + $0x10] sm:$0xff]
        %v863 = vld [vmem:[%s859 + $0x18] sm:$0x33]
        %vm864 = vsmask.f32 6400
        %v865 = vrot.slane %v585, 1
        %v866 = vrot.slane %v587, 2
        %v867 = vor.u32 %v865, %v866
        %v868 = vrot.slane %v596, 1
        %v869 = vrot.slane %v592, 2
        %v870 = vor.u32 %v868, %v869
        %v871 = vsel %vm864, %v867, %v870
        %v876 = vunpack.c.l.b16 %v860
        %v877 = vunpack.c.h.b16 %v860
        %v878 = vunpack.c.l.b16 %v861
        %v879 = vunpack.c.h.b16 %v861
        %v880 = vunpack.c.l.b16 %v862
        %v881 = vunpack.c.h.b16 %v862
        %v882 = vunpack.c.l.b16 %v863
        %v883 = vunpack.c.h.b16 %v863
        %v884 = vpack.c.b16 %v878, %v876
        %v885 = vpack.c.b16 %v879, %v877
        %v886 = vpack.c.b16 %v882, %v880
        %v887 = vpack.c.b16 %v883, %v881
        %v891 = vsel %vm617, %v871, 0
        %v894 = vsel %vm617, %v870, 0
        %v897 = vsel %vm624, %v886, 0
        %v900 = vsel %vm624, %v887, 0
        %902 = vmatprep.subr.bf16.mxu0 %v885
        %903 = vmatpush1.bf16.msra.mxu0 %v884
        %904 = vmatprep.subr.bf16.mxu0 %v900
        %905 = vmatpush1.bf16.msra.mxu0 %v897
        %906 = vmatprep.subr.bf16.mxu0 0
        %907 = vmatpush1.bf16.msra.mxu0 0
        %908 = vmatprep.subr.bf16.mxu0 0
        %909 = vmatpush1.bf16.msra.mxu0 0
        %910 = vmatprep.subr.bf16.mxu0 0
        %911 = vmatpush1.bf16.msra.mxu0 0
        %912 = vmatprep.subr.bf16.mxu0 0
        %913 = vmatpush1.bf16.msra.mxu0 0
        %914 = vmatprep.subr.bf16.mxu0 0
        %915 = vmatpush1.bf16.msra.mxu0 0
        %916 = vmatprep.subr.bf16.mxu0 0
        %917 = vmatpush1.bf16.msra.mxu0 0
        %918 = vmatprep.subr.bf16.mxu0 0
        %919 = vmatpush1.bf16.msra.mxu0 0
        %920 = vmatprep.subr.bf16.mxu0 0
        %921 = vmatpush1.bf16.msra.mxu0 0
        %922 = vmatprep.subr.bf16.mxu0 0
        %923 = vmatpush1.bf16.msra.mxu0 0
        %924 = vmatprep.subr.bf16.mxu0 0
        %925 = vmatpush1.bf16.msra.mxu0 0
        %926 = vmatprep.subr.bf16.mxu0 0
        %927 = vmatpush1.bf16.msra.mxu0 0
        %928 = vmatprep.subr.bf16.mxu0 0
        %929 = vmatpush1.bf16.msra.mxu0 0
        %930 = vmatprep.subr.bf16.mxu0 0
        %931 = vmatpush1.bf16.msra.mxu0 0
        %932 = vmatprep.subr.bf16.mxu0 0
        %933 = vmatpush1.bf16.msra.mxu0 0
        %934 = vmatprep.mubr.bf16.mxu0 0
        %935 = vmatmul.mubr.bf16.gmra.mrb[0].mxu0 %v891
        %v936 = vpop.f32.mrb[0].mxu0
        %v937 = vadd.f32 0.0, %v936
        %v938 = vpop.f32.mrb[0].mxu0
        %v939 = vadd.f32 0.0, %v938
        %v940 = vpop.f32.mrb[0].mxu0
        %v941 = vadd.f32 0.0, %v940
        %v942 = vpop.f32.mrb[0].mxu0
        %v943 = vadd.f32 0.0, %v942
        %944 = vmatprep.mubr.bf16.mxu0 0
        %945 = vmatmul.mubr.bf16.gmra.mrb[0].mxu0 %v894
        %v946 = vpop.f32.mrb[0].mxu0
        %v947 = vadd.f32 0.0, %v946
        %v948 = vpop.f32.mrb[0].mxu0
        %v949 = vadd.f32 0.0, %v948
        %v950 = vpop.f32.mrb[0].mxu0
        %v951 = vpop.f32.mrb[0].mxu0
        %952 = vdwg.mxu0
        %v953 = vadd.f32 %v853, %v937
        %v954 = vadd.f32 %v854, %v939
        %v955 = vadd.f32 %v855, %v941
        %v956 = vadd.f32 %v856, %v943
        %v957 = vadd.f32 %v857, %v947
        %v958 = vadd.f32 %v858, %v949
        %s959 = scalar_lea.vmem [#allocation2], 128
        %v960 = vld [vmem:[%s959] sm:$0xff]
        %v961 = vld [vmem:[%s959 + $0x8] sm:$0xff]
        %v962 = vld [vmem:[%s959 + $0x10] sm:$0xff]
        %v963 = vld [vmem:[%s959 + $0x18] sm:$0x33]
        %vm964 = vcmask 1045504
        %v965 = vrot.slane %v581, 2
        %v966 = vrot.slane %v582, 2
        %v967 = vsel %vm964, %v965, %v966
        %v972 = vunpack.c.l.b16 %v960
        %v973 = vunpack.c.h.b16 %v960
        %v974 = vunpack.c.l.b16 %v961
        %v975 = vunpack.c.h.b16 %v961
        %v976 = vunpack.c.l.b16 %v962
        %v977 = vunpack.c.h.b16 %v962
        %v978 = vunpack.c.l.b16 %v963
        %v979 = vunpack.c.h.b16 %v963
        %v980 = vpack.c.b16 %v974, %v972
        %v981 = vpack.c.b16 %v975, %v973
        %v982 = vpack.c.b16 %v978, %v976
        %v983 = vpack.c.b16 %v979, %v977
        %v987 = vsel %vm617, %v967, 0
        %v990 = vsel %vm617, %v966, 0
        %v993 = vsel %vm624, %v982, 0
        %v996 = vsel %vm624, %v983, 0
        %998 = vmatprep.subr.bf16.mxu0 %v981
        %999 = vmatpush1.bf16.msra.mxu0 %v980
        %1000 = vmatprep.subr.bf16.mxu0 %v996
        %1001 = vmatpush1.bf16.msra.mxu0 %v993
        %1002 = vmatprep.subr.bf16.mxu0 0
        %1003 = vmatpush1.bf16.msra.mxu0 0
        %1004 = vmatprep.subr.bf16.mxu0 0
        %1005 = vmatpush1.bf16.msra.mxu0 0
        %1006 = vmatprep.subr.bf16.mxu0 0
        %1007 = vmatpush1.bf16.msra.mxu0 0
        %1008 = vmatprep.subr.bf16.mxu0 0
        %1009 = vmatpush1.bf16.msra.mxu0 0
        %1010 = vmatprep.subr.bf16.mxu0 0
        %1011 = vmatpush1.bf16.msra.mxu0 0
        %1012 = vmatprep.subr.bf16.mxu0 0
        %1013 = vmatpush1.bf16.msra.mxu0 0
        %1014 = vmatprep.subr.bf16.mxu0 0
        %1015 = vmatpush1.bf16.msra.mxu0 0
        %1016 = vmatprep.subr.bf16.mxu0 0
        %1017 = vmatpush1.bf16.msra.mxu0 0
        %1018 = vmatprep.subr.bf16.mxu0 0
        %1019 = vmatpush1.bf16.msra.mxu0 0
        %1020 = vmatprep.subr.bf16.mxu0 0
        %1021 = vmatpush1.bf16.msra.mxu0 0
        %1022 = vmatprep.subr.bf16.mxu0 0
        %1023 = vmatpush1.bf16.msra.mxu0 0
        %1024 = vmatprep.subr.bf16.mxu0 0
        %1025 = vmatpush1.bf16.msra.mxu0 0
        %1026 = vmatprep.subr.bf16.mxu0 0
        %1027 = vmatpush1.bf16.msra.mxu0 0
        %1028 = vmatprep.subr.bf16.mxu0 0
        %1029 = vmatpush1.bf16.msra.mxu0 0
        %1030 = vmatprep.mubr.bf16.mxu0 0
        %1031 = vmatmul.mubr.bf16.gmra.mrb[0].mxu0 %v987
        %v1032 = vpop.f32.mrb[0].mxu0
        %v1033 = vadd.f32 0.0, %v1032
        %v1034 = vpop.f32.mrb[0].mxu0
        %v1035 = vadd.f32 0.0, %v1034
        %v1036 = vpop.f32.mrb[0].mxu0
        %v1037 = vadd.f32 0.0, %v1036
        %v1038 = vpop.f32.mrb[0].mxu0
        %v1039 = vadd.f32 0.0, %v1038
        %1040 = vmatprep.mubr.bf16.mxu0 0
        %1041 = vmatmul.mubr.bf16.gmra.mrb[0].mxu0 %v990
        %v1042 = vpop.f32.mrb[0].mxu0
        %v1043 = vadd.f32 0.0, %v1042
        %v1044 = vpop.f32.mrb[0].mxu0
        %v1045 = vadd.f32 0.0, %v1044
        %v1046 = vpop.f32.mrb[0].mxu0
        %v1047 = vpop.f32.mrb[0].mxu0
        %1048 = vdwg.mxu0
        %v1049 = vadd.f32 %v953, %v1033
        %v1050 = vadd.f32 %v954, %v1035
        %v1051 = vadd.f32 %v955, %v1037
        %v1052 = vadd.f32 %v956, %v1039
        %v1053 = vadd.f32 %v957, %v1043
        %v1054 = vadd.f32 %v958, %v1045
        %v1055 = vld [vmem:[#allocation5] sm:$0x3]
        %v1057 = vlaneseq
        %v1058 = vshrl.u32 %v1057, 7
        %v1059 = vsub.s32 0, %v1058
        %v1060 = vrot.slane %v1055, %v1059
        %v1061 = vlaneseq
        %v1062 = vshrl.u32 %v1061, 7
        %v1063 = vsub.s32 1, %v1062
        %v1064 = vrot.slane %v1055, %v1063
        %v1067 = vadd.f32 %v1049, %v1060
        %v1068 = vadd.f32 %v1050, %v1064
        %v1069 = vadd.f32 %v1051, %v1060
        %v1070 = vadd.f32 %v1052, %v1064
        %v1071 = vadd.f32 %v1053, %v1060
        %v1072 = vadd.f32 %v1054, %v1064
        %v1073 = vpack.c.bf16 %v1069, %v1067
        %v1074 = vpack.c.bf16 %v1070, %v1068
        %v1075 = vpack.c.bf16 %v1071, %v1071
        %v1076 = vpack.c.bf16 %v1072, %v1072
        %v1077 = vtanh.bf16.pop %v1073
        %v1078 = vtanh.bf16.pop %v1074
        %v1079 = vtanh.bf16.pop %v1075
        %v1080 = vtanh.bf16.pop %v1076
        %v1081 = vld [vmem:[#allocation7] sm:$0xf]
        %v1082 = vld [vmem:[#allocation7 + $0x4] sm:$0x3]
        %v1085 = vunpack.c.l.b16 %v1081
        %v1086 = vunpack.c.l.b16 %v1082
        %v1087 = vpack.c.b16 %v1086, %v1085
        %vm1088 = vcmask 195584
        %v1090 = vsel %vm1088, %v1087, 0
        %vm1092 = vcmask 1043456
        %v1094 = vsel %vm1092, %v1079, 0
        %v1097 = vsel %vm1092, %v1080, 0
        %1099 = vmatprep.subr.bf16.mxu0 %v1078
        %1100 = vmatpush1.bf16.msra.mxu0 %v1077
        %1101 = vmatprep.subr.bf16.mxu0 %v1097
        %1102 = vmatpush1.bf16.msra.mxu0 %v1094
        %1103 = vmatprep.subr.bf16.mxu0 0
        %1104 = vmatpush1.bf16.msra.mxu0 0
        %1105 = vmatprep.subr.bf16.mxu0 0
        %1106 = vmatpush1.bf16.msra.mxu0 0
        %1107 = vmatprep.subr.bf16.mxu0 0
        %1108 = vmatpush1.bf16.msra.mxu0 0
        %1109 = vmatprep.subr.bf16.mxu0 0
        %1110 = vmatpush1.bf16.msra.mxu0 0
        %1111 = vmatprep.subr.bf16.mxu0 0
        %1112 = vmatpush1.bf16.msra.mxu0 0
        %1113 = vmatprep.subr.bf16.mxu0 0
        %1114 = vmatpush1.bf16.msra.mxu0 0
        %1115 = vmatprep.subr.bf16.mxu0 0
        %1116 = vmatpush1.bf16.msra.mxu0 0
        %1117 = vmatprep.subr.bf16.mxu0 0
        %1118 = vmatpush1.bf16.msra.mxu0 0
        %1119 = vmatprep.subr.bf16.mxu0 0
        %1120 = vmatpush1.bf16.msra.mxu0 0
        %1121 = vmatprep.subr.bf16.mxu0 0
        %1122 = vmatpush1.bf16.msra.mxu0 0
        %1123 = vmatprep.subr.bf16.mxu0 0
        %1124 = vmatpush1.bf16.msra.mxu0 0
        %1125 = vmatprep.subr.bf16.mxu0 0
        %1126 = vmatpush1.bf16.msra.mxu0 0
        %1127 = vmatprep.subr.bf16.mxu0 0
        %1128 = vmatpush1.bf16.msra.mxu0 0
        %1129 = vmatprep.subr.bf16.mxu0 0
        %1130 = vmatpush1.bf16.msra.mxu0 0
        %1131 = vmatprep.mubr.bf16.mxu0 0
        %1132 = vmatmul.mubr.bf16.gmra.mrb[0].mxu0 %v1090
        %v1133 = vpop.f32.mrb[0].mxu0
        %v1134 = vadd.f32 0.0, %v1133
        %v1135 = vpop.f32.mrb[0].mxu0
        %v1136 = vadd.f32 0.0, %v1135
        %v1137 = vpop.f32.mrb[0].mxu0
        %v1138 = vadd.f32 0.0, %v1137
        %v1139 = vpop.f32.mrb[0].mxu0
        %v1140 = vadd.f32 0.0, %v1139
        %1141 = vdwg.mxu0
        %v1142 = vpack.c.bf16 %v1138, %v1134
        %v1143 = vpack.c.bf16 %v1140, %v1136
        %v1144 = vld [vmem:[#allocation8] sm:$0xf]
        %v1145 = vld [vmem:[#allocation8 + $0x4] sm:$0xf]
        %v1146 = vld [vmem:[#allocation8 + $0x8] sm:$0xf]
        %v1147 = vld [vmem:[#allocation8 + $0xc] sm:$0xf]
        %v1148 = vld [vmem:[#allocation8 + $0x10] sm:$0xf]
        %v1149 = vld [vmem:[#allocation8 + $0x14] sm:$0xf]
        %v1150 = vld [vmem:[#allocation8 + $0x18] sm:$0xf]
        %v1151 = vld [vmem:[#allocation8 + $0x1c] sm:$0xf]
        %v1152 = vld [vmem:[#allocation8 + $0x20] sm:$0xf]
        %v1153 = vld [vmem:[#allocation8 + $0x24] sm:$0xf]
        %v1154 = vld [vmem:[#allocation8 + $0x28] sm:$0xf]
        %v1155 = vld [vmem:[#allocation8 + $0x2c] sm:$0xf]
        %v1156 = vld [vmem:[#allocation8 + $0x30] sm:$0xf]
        %v1157 = vld [vmem:[#allocation8 + $0x34] sm:$0xf]
        %v1158 = vld [vmem:[#allocation8 + $0x38] sm:$0xf]
        %v1159 = vld [vmem:[#allocation8 + $0x3c] sm:$0xf]
        %v1160 = vld [vmem:[#allocation8 + $0x40] sm:$0xf]
        %v1161 = vld [vmem:[#allocation8 + $0x44] sm:$0xf]
        %s1162 = scalar_lea.vmem [#allocation8], 72
        %v1163 = vld [vmem:[%s1162] sm:$0xf]
        %v1164 = vld [vmem:[%s1162 + $0x4] sm:$0xf]
        %v1165 = vld [vmem:[%s1162 + $0x8] sm:$0xf]
        %v1166 = vld [vmem:[%s1162 + $0xc] sm:$0xf]
        %v1167 = vld [vmem:[%s1162 + $0x10] sm:$0xf]
        %v1168 = vld [vmem:[%s1162 + $0x14] sm:$0xf]
        %v1169 = vld [vmem:[%s1162 + $0x18] sm:$0xf]
        %v1170 = vld [vmem:[%s1162 + $0x1c] sm:$0xf]
        %v1171 = vld [vmem:[%s1162 + $0x20] sm:$0xf]
        %v1172 = vld [vmem:[%s1162 + $0x24] sm:$0xf]
        %v1173 = vld [vmem:[%s1162 + $0x28] sm:$0xf]
        %v1174 = vld [vmem:[%s1162 + $0x2c] sm:$0xf]
        %v1175 = vld [vmem:[%s1162 + $0x30] sm:$0xf]
        %v1176 = vld [vmem:[%s1162 + $0x34] sm:$0xf]
        %v1177 = vld [vmem:[%s1162 + $0x38] sm:$0xf]
        %v1178 = vld [vmem:[%s1162 + $0x3c] sm:$0xf]
        %v1179 = vld [vmem:[%s1162 + $0x40] sm:$0xf]
        %v1180 = vld [vmem:[%s1162 + $0x44] sm:$0xf]
        %v1182 = vshrl.u32 %v1142, 16
        %v1184 = vshll.u32 %v1142, 16
        %v1186 = vrot.slane %v1184, 1
        %v1187 = vor.u32 %v1182, %v1186
        %v1189 = vshrl.u32 %v1143, 16
        %v1191 = vshll.u32 %v1143, 16
        %v1193 = vrot.slane %v1191, 1
        %v1194 = vor.u32 %v1189, %v1193
        %v1214 = vunpack.c.l.b16 %v1163
        %v1215 = vunpack.c.l.b16 %v1164
        %v1216 = vunpack.c.l.b16 %v1165
        %v1217 = vunpack.c.l.b16 %v1166
        %v1218 = vunpack.c.l.b16 %v1167
        %v1219 = vunpack.c.l.b16 %v1168
        %v1220 = vunpack.c.l.b16 %v1169
        %v1221 = vunpack.c.l.b16 %v1170
        %v1222 = vunpack.c.l.b16 %v1171
        %v1223 = vunpack.c.l.b16 %v1172
        %v1224 = vunpack.c.l.b16 %v1173
        %v1225 = vunpack.c.l.b16 %v1174
        %v1226 = vunpack.c.l.b16 %v1175
        %v1227 = vunpack.c.l.b16 %v1176
        %v1228 = vunpack.c.l.b16 %v1177
        %v1229 = vunpack.c.l.b16 %v1178
        %v1230 = vunpack.c.l.b16 %v1179
        %v1231 = vunpack.c.l.b16 %v1180
        %v1232 = vpack.c.b16 %v1215, %v1214
        %v1233 = vpack.c.b16 %v1217, %v1216
        %v1234 = vpack.c.b16 %v1219, %v1218
        %v1235 = vpack.c.b16 %v1221, %v1220
        %v1236 = vpack.c.b16 %v1223, %v1222
        %v1237 = vpack.c.b16 %v1225, %v1224
        %v1238 = vpack.c.b16 %v1227, %v1226
        %v1239 = vpack.c.b16 %v1229, %v1228
        %v1240 = vpack.c.b16 %v1231, %v1230
        %vm1250 = vcmask 130048
        %v1252 = vsel %vm1250, %v1194, 0
        %1254 = vmatprep.subr.bf16.mxu0 0
        %1255 = vmatpush1.bf16.msra.mxu0 %v1232
        %1256 = vmatprep.subr.bf16.mxu0 0
        %1257 = vmatpush1.bf16.msra.mxu0 %v1233
        %1258 = vmatprep.subr.bf16.mxu0 0
        %1259 = vmatpush1.bf16.msra.mxu0 %v1234
        %1260 = vmatprep.subr.bf16.mxu0 0
        %1261 = vmatpush1.bf16.msra.mxu0 %v1235
        %1262 = vmatprep.subr.bf16.mxu0 0
        %1263 = vmatpush1.bf16.msra.mxu0 %v1236
        %1264 = vmatprep.subr.bf16.mxu0 0
        %1265 = vmatpush1.bf16.msra.mxu0 %v1237
        %1266 = vmatprep.subr.bf16.mxu0 0
        %1267 = vmatpush1.bf16.msra.mxu0 %v1238
        %1268 = vmatprep.subr.bf16.mxu0 0
        %1269 = vmatpush1.bf16.msra.mxu0 %v1239
        %1270 = vmatprep.subr.bf16.mxu0 0
        %1271 = vmatpush1.bf16.msra.mxu0 %v1240
        %1272 = vmatprep.subr.bf16.mxu0 0
        %1273 = vmatpush1.bf16.msra.mxu0 0
        %1274 = vmatprep.subr.bf16.mxu0 0
        %1275 = vmatpush1.bf16.msra.mxu0 0
        %1276 = vmatprep.subr.bf16.mxu0 0
        %1277 = vmatpush1.bf16.msra.mxu0 0
        %1278 = vmatprep.subr.bf16.mxu0 0
        %1279 = vmatpush1.bf16.msra.mxu0 0
        %1280 = vmatprep.subr.bf16.mxu0 0
        %1281 = vmatpush1.bf16.msra.mxu0 0
        %1282 = vmatprep.subr.bf16.mxu0 0
        %1283 = vmatpush1.bf16.msra.mxu0 0
        %1284 = vmatprep.subr.bf16.mxu0 0
        %1285 = vmatpush1.bf16.msra.mxu0 0
        %1286 = vmatprep.mubr.bf16.mxu0 %v1252
        %1287 = vmatmul.mubr.bf16.gmra.mrb[0].mxu0 %v1187
        %v1288 = vpop.f32.mrb[0].mxu0
        %v1289 = vadd.f32 0.0, %v1288
        %v1290 = vpop.f32.mrb[0].mxu0
        %v1291 = vpop.f32.mrb[0].mxu0
        %v1292 = vpop.f32.mrb[0].mxu0
        %1293 = vdwg.mxu0
        %v1312 = vunpack.c.l.b16 %v1144
        %v1313 = vunpack.c.l.b16 %v1145
        %v1314 = vunpack.c.l.b16 %v1146
        %v1315 = vunpack.c.l.b16 %v1147
        %v1316 = vunpack.c.l.b16 %v1148
        %v1317 = vunpack.c.l.b16 %v1149
        %v1318 = vunpack.c.l.b16 %v1150
        %v1319 = vunpack.c.l.b16 %v1151
        %v1320 = vunpack.c.l.b16 %v1152
        %v1321 = vunpack.c.l.b16 %v1153
        %v1322 = vunpack.c.l.b16 %v1154
        %v1323 = vunpack.c.l.b16 %v1155
        %v1324 = vunpack.c.l.b16 %v1156
        %v1325 = vunpack.c.l.b16 %v1157
        %v1326 = vunpack.c.l.b16 %v1158
        %v1327 = vunpack.c.l.b16 %v1159
        %v1328 = vunpack.c.l.b16 %v1160
        %v1329 = vunpack.c.l.b16 %v1161
        %v1330 = vpack.c.b16 %v1313, %v1312
        %v1331 = vpack.c.b16 %v1315, %v1314
        %v1332 = vpack.c.b16 %v1317, %v1316
        %v1333 = vpack.c.b16 %v1319, %v1318
        %v1334 = vpack.c.b16 %v1321, %v1320
        %v1335 = vpack.c.b16 %v1323, %v1322
        %v1336 = vpack.c.b16 %v1325, %v1324
        %v1337 = vpack.c.b16 %v1327, %v1326
        %v1338 = vpack.c.b16 %v1329, %v1328
        %v1348 = vsel %vm1250, %v1143, 0
        %1350 = vmatprep.subr.bf16.mxu0 0
        %1351 = vmatpush1.bf16.msra.mxu0 %v1330
        %1352 = vmatprep.subr.bf16.mxu0 0
        %1353 = vmatpush1.bf16.msra.mxu0 %v1331
        %1354 = vmatprep.subr.bf16.mxu0 0
        %1355 = vmatpush1.bf16.msra.mxu0 %v1332
        %1356 = vmatprep.subr.bf16.mxu0 0
        %1357 = vmatpush1.bf16.msra.mxu0 %v1333
        %1358 = vmatprep.subr.bf16.mxu0 0
        %1359 = vmatpush1.bf16.msra.mxu0 %v1334
        %1360 = vmatprep.subr.bf16.mxu0 0
        %1361 = vmatpush1.bf16.msra.mxu0 %v1335
        %1362 = vmatprep.subr.bf16.mxu0 0
        %1363 = vmatpush1.bf16.msra.mxu0 %v1336
        %1364 = vmatprep.subr.bf16.mxu0 0
        %1365 = vmatpush1.bf16.msra.mxu0 %v1337
        %1366 = vmatprep.subr.bf16.mxu0 0
        %1367 = vmatpush1.bf16.msra.mxu0 %v1338
        %1368 = vmatprep.subr.bf16.mxu0 0
        %1369 = vmatpush1.bf16.msra.mxu0 0
        %1370 = vmatprep.subr.bf16.mxu0 0
        %1371 = vmatpush1.bf16.msra.mxu0 0
        %1372 = vmatprep.subr.bf16.mxu0 0
        %1373 = vmatpush1.bf16.msra.mxu0 0
        %1374 = vmatprep.subr.bf16.mxu0 0
        %1375 = vmatpush1.bf16.msra.mxu0 0
        %1376 = vmatprep.subr.bf16.mxu0 0
        %1377 = vmatpush1.bf16.msra.mxu0 0
        %1378 = vmatprep.subr.bf16.mxu0 0
        %1379 = vmatpush1.bf16.msra.mxu0 0
        %1380 = vmatprep.subr.bf16.mxu0 0
        %1381 = vmatpush1.bf16.msra.mxu0 0
        %1382 = vmatprep.mubr.bf16.mxu0 %v1348
        %1383 = vmatmul.mubr.bf16.gmra.mrb[0].mxu0 %v1142
        %v1384 = vpop.f32.mrb[0].mxu0
        %v1385 = vadd.f32 %v1289, %v1384
        %v1386 = vpop.f32.mrb[0].mxu0
        %v1387 = vpop.f32.mrb[0].mxu0
        %v1388 = vpop.f32.mrb[0].mxu0
        %1389 = vdwg.mxu0
        %s1390 = scalar_lea.vmem [#allocation8], 144
        %v1391 = vld [vmem:[%s1390] sm:$0xf]
        %v1392 = vld [vmem:[%s1390 + $0x4] sm:$0xf]
        %v1393 = vld [vmem:[%s1390 + $0x8] sm:$0xf]
        %v1394 = vld [vmem:[%s1390 + $0xc] sm:$0xf]
        %v1395 = vld [vmem:[%s1390 + $0x10] sm:$0xf]
        %v1396 = vld [vmem:[%s1390 + $0x14] sm:$0xf]
        %v1397 = vld [vmem:[%s1390 + $0x18] sm:$0xf]
        %v1398 = vld [vmem:[%s1390 + $0x1c] sm:$0xf]
        %v1399 = vld [vmem:[%s1390 + $0x20] sm:$0xf]
        %v1400 = vld [vmem:[%s1390 + $0x24] sm:$0xf]
        %v1401 = vld [vmem:[%s1390 + $0x28] sm:$0xf]
        %v1402 = vld [vmem:[%s1390 + $0x2c] sm:$0xf]
        %v1403 = vld [vmem:[%s1390 + $0x30] sm:$0xf]
        %v1404 = vld [vmem:[%s1390 + $0x34] sm:$0xf]
        %v1405 = vld [vmem:[%s1390 + $0x38] sm:$0xf]
        %v1406 = vld [vmem:[%s1390 + $0x3c] sm:$0xf]
        %v1407 = vld [vmem:[%s1390 + $0x40] sm:$0xf]
        %v1408 = vld [vmem:[%s1390 + $0x44] sm:$0xf]
        %v1411 = vrot.slane %v1142, 1
        %v1412 = vrot.slane %v1143, 1
        %v1432 = vunpack.c.l.b16 %v1391
        %v1433 = vunpack.c.l.b16 %v1392
        %v1434 = vunpack.c.l.b16 %v1393
        %v1435 = vunpack.c.l.b16 %v1394
        %v1436 = vunpack.c.l.b16 %v1395
        %v1437 = vunpack.c.l.b16 %v1396
        %v1438 = vunpack.c.l.b16 %v1397
        %v1439 = vunpack.c.l.b16 %v1398
        %v1440 = vunpack.c.l.b16 %v1399
        %v1441 = vunpack.c.l.b16 %v1400
        %v1442 = vunpack.c.l.b16 %v1401
        %v1443 = vunpack.c.l.b16 %v1402
        %v1444 = vunpack.c.l.b16 %v1403
        %v1445 = vunpack.c.l.b16 %v1404
        %v1446 = vunpack.c.l.b16 %v1405
        %v1447 = vunpack.c.l.b16 %v1406
        %v1448 = vunpack.c.l.b16 %v1407
        %v1449 = vunpack.c.l.b16 %v1408
        %v1450 = vpack.c.b16 %v1433, %v1432
        %v1451 = vpack.c.b16 %v1435, %v1434
        %v1452 = vpack.c.b16 %v1437, %v1436
        %v1453 = vpack.c.b16 %v1439, %v1438
        %v1454 = vpack.c.b16 %v1441, %v1440
        %v1455 = vpack.c.b16 %v1443, %v1442
        %v1456 = vpack.c.b16 %v1445, %v1444
        %v1457 = vpack.c.b16 %v1447, %v1446
        %v1458 = vpack.c.b16 %v1449, %v1448
        %v1469 = vsel %vm1250, %v1412, 0
        %1471 = vmatprep.subr.bf16.mxu0 0
        %1472 = vmatpush1.bf16.msra.mxu0 %v1450
        %1473 = vmatprep.subr.bf16.mxu0 0
        %1474 = vmatpush1.bf16.msra.mxu0 %v1451
        %1475 = vmatprep.subr.bf16.mxu0 0
        %1476 = vmatpush1.bf16.msra.mxu0 %v1452
        %1477 = vmatprep.subr.bf16.mxu0 0
        %1478 = vmatpush1.bf16.msra.mxu0 %v1453
        %1479 = vmatprep.subr.bf16.mxu0 0
        %1480 = vmatpush1.bf16.msra.mxu0 %v1454
        %1481 = vmatprep.subr.bf16.mxu0 0
        %1482 = vmatpush1.bf16.msra.mxu0 %v1455
        %1483 = vmatprep.subr.bf16.mxu0 0
        %1484 = vmatpush1.bf16.msra.mxu0 %v1456
        %1485 = vmatprep.subr.bf16.mxu0 0
        %1486 = vmatpush1.bf16.msra.mxu0 %v1457
        %1487 = vmatprep.subr.bf16.mxu0 0
        %1488 = vmatpush1.bf16.msra.mxu0 %v1458
        %1489 = vmatprep.subr.bf16.mxu0 0
        %1490 = vmatpush1.bf16.msra.mxu0 0
        %1491 = vmatprep.subr.bf16.mxu0 0
        %1492 = vmatpush1.bf16.msra.mxu0 0
        %1493 = vmatprep.subr.bf16.mxu0 0
        %1494 = vmatpush1.bf16.msra.mxu0 0
        %1495 = vmatprep.subr.bf16.mxu0 0
        %1496 = vmatpush1.bf16.msra.mxu0 0
        %1497 = vmatprep.subr.bf16.mxu0 0
        %1498 = vmatpush1.bf16.msra.mxu0 0
        %1499 = vmatprep.subr.bf16.mxu0 0
        %1500 = vmatpush1.bf16.msra.mxu0 0
        %1501 = vmatprep.subr.bf16.mxu0 0
        %1502 = vmatpush1.bf16.msra.mxu0 0
        %1503 = vmatprep.mubr.bf16.mxu0 %v1469
        %1504 = vmatmul.mubr.bf16.gmra.mrb[0].mxu0 %v1411
        %v1505 = vpop.f32.mrb[0].mxu0
        %v1506 = vadd.f32 0.0, %v1505
        %v1507 = vpop.f32.mrb[0].mxu0
        %v1508 = vpop.f32.mrb[0].mxu0
        %v1509 = vpop.f32.mrb[0].mxu0
        %1510 = vdwg.mxu0
        %v1511 = vadd.f32 %v1385, %v1506
        %s1512 = scalar_lea.vmem [#allocation8], 216
        %v1513 = vld [vmem:[%s1512] sm:$0xf]
        %v1514 = vld [vmem:[%s1512 + $0x4] sm:$0xf]
        %v1515 = vld [vmem:[%s1512 + $0x8] sm:$0xf]
        %v1516 = vld [vmem:[%s1512 + $0xc] sm:$0xf]
        %v1517 = vld [vmem:[%s1512 + $0x10] sm:$0xf]
        %v1518 = vld [vmem:[%s1512 + $0x14] sm:$0xf]
        %v1519 = vld [vmem:[%s1512 + $0x18] sm:$0xf]
        %v1520 = vld [vmem:[%s1512 + $0x1c] sm:$0xf]
        %v1521 = vld [vmem:[%s1512 + $0x20] sm:$0xf]
        %v1522 = vld [vmem:[%s1512 + $0x24] sm:$0xf]
        %v1523 = vld [vmem:[%s1512 + $0x28] sm:$0xf]
        %v1524 = vld [vmem:[%s1512 + $0x2c] sm:$0xf]
        %v1525 = vld [vmem:[%s1512 + $0x30] sm:$0xf]
        %v1526 = vld [vmem:[%s1512 + $0x34] sm:$0xf]
        %v1527 = vld [vmem:[%s1512 + $0x38] sm:$0xf]
        %v1528 = vld [vmem:[%s1512 + $0x3c] sm:$0xf]
        %v1529 = vld [vmem:[%s1512 + $0x40] sm:$0xf]
        %v1530 = vld [vmem:[%s1512 + $0x44] sm:$0xf]
        %v1531 = vrot.slane %v1182, 1
        %v1532 = vrot.slane %v1184, 2
        %v1533 = vor.u32 %v1531, %v1532
        %v1534 = vrot.slane %v1189, 1
        %v1535 = vrot.slane %v1191, 2
        %v1536 = vor.u32 %v1534, %v1535
        %v1556 = vunpack.c.l.b16 %v1513
        %v1557 = vunpack.c.l.b16 %v1514
        %v1558 = vunpack.c.l.b16 %v1515
        %v1559 = vunpack.c.l.b16 %v1516
        %v1560 = vunpack.c.l.b16 %v1517
        %v1561 = vunpack.c.l.b16 %v1518
        %v1562 = vunpack.c.l.b16 %v1519
        %v1563 = vunpack.c.l.b16 %v1520
        %v1564 = vunpack.c.l.b16 %v1521
        %v1565 = vunpack.c.l.b16 %v1522
        %v1566 = vunpack.c.l.b16 %v1523
        %v1567 = vunpack.c.l.b16 %v1524
        %v1568 = vunpack.c.l.b16 %v1525
        %v1569 = vunpack.c.l.b16 %v1526
        %v1570 = vunpack.c.l.b16 %v1527
        %v1571 = vunpack.c.l.b16 %v1528
        %v1572 = vunpack.c.l.b16 %v1529
        %v1573 = vunpack.c.l.b16 %v1530
        %v1574 = vpack.c.b16 %v1557, %v1556
        %v1575 = vpack.c.b16 %v1559, %v1558
        %v1576 = vpack.c.b16 %v1561, %v1560
        %v1577 = vpack.c.b16 %v1563, %v1562
        %v1578 = vpack.c.b16 %v1565, %v1564
        %v1579 = vpack.c.b16 %v1567, %v1566
        %v1580 = vpack.c.b16 %v1569, %v1568
        %v1581 = vpack.c.b16 %v1571, %v1570
        %v1582 = vpack.c.b16 %v1573, %v1572
        %v1593 = vsel %vm1250, %v1536, 0
        %1595 = vmatprep.subr.bf16.mxu0 0
        %1596 = vmatpush1.bf16.msra.mxu0 %v1574
        %1597 = vmatprep.subr.bf16.mxu0 0
        %1598 = vmatpush1.bf16.msra.mxu0 %v1575
        %1599 = vmatprep.subr.bf16.mxu0 0
        %1600 = vmatpush1.bf16.msra.mxu0 %v1576
        %1601 = vmatprep.subr.bf16.mxu0 0
        %1602 = vmatpush1.bf16.msra.mxu0 %v1577
        %1603 = vmatprep.subr.bf16.mxu0 0
        %1604 = vmatpush1.bf16.msra.mxu0 %v1578
        %1605 = vmatprep.subr.bf16.mxu0 0
        %1606 = vmatpush1.bf16.msra.mxu0 %v1579
        %1607 = vmatprep.subr.bf16.mxu0 0
        %1608 = vmatpush1.bf16.msra.mxu0 %v1580
        %1609 = vmatprep.subr.bf16.mxu0 0
        %1610 = vmatpush1.bf16.msra.mxu0 %v1581
        %1611 = vmatprep.subr.bf16.mxu0 0
        %1612 = vmatpush1.bf16.msra.mxu0 %v1582
        %1613 = vmatprep.subr.bf16.mxu0 0
        %1614 = vmatpush1.bf16.msra.mxu0 0
        %1615 = vmatprep.subr.bf16.mxu0 0
        %1616 = vmatpush1.bf16.msra.mxu0 0
        %1617 = vmatprep.subr.bf16.mxu0 0
        %1618 = vmatpush1.bf16.msra.mxu0 0
        %1619 = vmatprep.subr.bf16.mxu0 0
        %1620 = vmatpush1.bf16.msra.mxu0 0
        %1621 = vmatprep.subr.bf16.mxu0 0
        %1622 = vmatpush1.bf16.msra.mxu0 0
        %1623 = vmatprep.subr.bf16.mxu0 0
        %1624 = vmatpush1.bf16.msra.mxu0 0
        %1625 = vmatprep.subr.bf16.mxu0 0
        %1626 = vmatpush1.bf16.msra.mxu0 0
        %1627 = vmatprep.mubr.bf16.mxu0 %v1593
        %1628 = vmatmul.mubr.bf16.gmra.mrb[0].mxu0 %v1533
        %v1629 = vpop.f32.mrb[0].mxu0
        %v1630 = vadd.f32 0.0, %v1629
        %v1631 = vpop.f32.mrb[0].mxu0
        %v1632 = vpop.f32.mrb[0].mxu0
        %v1633 = vpop.f32.mrb[0].mxu0
        %1634 = vdwg.mxu0
        %v1635 = vadd.f32 %v1511, %v1630
        %s1636 = scalar_lea.vmem [#allocation8], 288
        %v1637 = vld [vmem:[%s1636] sm:$0xf]
        %v1638 = vld [vmem:[%s1636 + $0x4] sm:$0xf]
        %v1639 = vld [vmem:[%s1636 + $0x8] sm:$0xf]
        %v1640 = vld [vmem:[%s1636 + $0xc] sm:$0xf]
        %v1641 = vld [vmem:[%s1636 + $0x10] sm:$0xf]
        %v1642 = vld [vmem:[%s1636 + $0x14] sm:$0xf]
        %v1643 = vld [vmem:[%s1636 + $0x18] sm:$0xf]
        %v1644 = vld [vmem:[%s1636 + $0x1c] sm:$0xf]
        %v1645 = vld [vmem:[%s1636 + $0x20] sm:$0xf]
        %v1646 = vld [vmem:[%s1636 + $0x24] sm:$0xf]
        %v1647 = vld [vmem:[%s1636 + $0x28] sm:$0xf]
        %v1648 = vld [vmem:[%s1636 + $0x2c] sm:$0xf]
        %v1649 = vld [vmem:[%s1636 + $0x30] sm:$0xf]
        %v1650 = vld [vmem:[%s1636 + $0x34] sm:$0xf]
        %v1651 = vld [vmem:[%s1636 + $0x38] sm:$0xf]
        %v1652 = vld [vmem:[%s1636 + $0x3c] sm:$0xf]
        %v1653 = vld [vmem:[%s1636 + $0x40] sm:$0xf]
        %v1654 = vld [vmem:[%s1636 + $0x44] sm:$0xf]
        %v1655 = vrot.slane %v1142, 2
        %v1656 = vrot.slane %v1143, 2
        %v1676 = vunpack.c.l.b16 %v1637
        %v1677 = vunpack.c.l.b16 %v1638
        %v1678 = vunpack.c.l.b16 %v1639
        %v1679 = vunpack.c.l.b16 %v1640
        %v1680 = vunpack.c.l.b16 %v1641
        %v1681 = vunpack.c.l.b16 %v1642
        %v1682 = vunpack.c.l.b16 %v1643
        %v1683 = vunpack.c.l.b16 %v1644
        %v1684 = vunpack.c.l.b16 %v1645
        %v1685 = vunpack.c.l.b16 %v1646
        %v1686 = vunpack.c.l.b16 %v1647
        %v1687 = vunpack.c.l.b16 %v1648
        %v1688 = vunpack.c.l.b16 %v1649
        %v1689 = vunpack.c.l.b16 %v1650
        %v1690 = vunpack.c.l.b16 %v1651
        %v1691 = vunpack.c.l.b16 %v1652
        %v1692 = vunpack.c.l.b16 %v1653
        %v1693 = vunpack.c.l.b16 %v1654
        %v1694 = vpack.c.b16 %v1677, %v1676
        %v1695 = vpack.c.b16 %v1679, %v1678
        %v1696 = vpack.c.b16 %v1681, %v1680
        %v1697 = vpack.c.b16 %v1683, %v1682
        %v1698 = vpack.c.b16 %v1685, %v1684
        %v1699 = vpack.c.b16 %v1687, %v1686
        %v1700 = vpack.c.b16 %v1689, %v1688
        %v1701 = vpack.c.b16 %v1691, %v1690
        %v1702 = vpack.c.b16 %v1693, %v1692
        %v1713 = vsel %vm1250, %v1656, 0
        %1715 = vmatprep.subr.bf16.mxu0 0
        %1716 = vmatpush1.bf16.msra.mxu0 %v1694
        %1717 = vmatprep.subr.bf16.mxu0 0
        %1718 = vmatpush1.bf16.msra.mxu0 %v1695
        %1719 = vmatprep.subr.bf16.mxu0 0
        %1720 = vmatpush1.bf16.msra.mxu0 %v1696
        %1721 = vmatprep.subr.bf16.mxu0 0
        %1722 = vmatpush1.bf16.msra.mxu0 %v1697
        %1723 = vmatprep.subr.bf16.mxu0 0
        %1724 = vmatpush1.bf16.msra.mxu0 %v1698
        %1725 = vmatprep.subr.bf16.mxu0 0
        %1726 = vmatpush1.bf16.msra.mxu0 %v1699
        %1727 = vmatprep.subr.bf16.mxu0 0
        %1728 = vmatpush1.bf16.msra.mxu0 %v1700
        %1729 = vmatprep.subr.bf16.mxu0 0
        %1730 = vmatpush1.bf16.msra.mxu0 %v1701
        %1731 = vmatprep.subr.bf16.mxu0 0
        %1732 = vmatpush1.bf16.msra.mxu0 %v1702
        %1733 = vmatprep.subr.bf16.mxu0 0
        %1734 = vmatpush1.bf16.msra.mxu0 0
        %1735 = vmatprep.subr.bf16.mxu0 0
        %1736 = vmatpush1.bf16.msra.mxu0 0
        %1737 = vmatprep.subr.bf16.mxu0 0
        %1738 = vmatpush1.bf16.msra.mxu0 0
        %1739 = vmatprep.subr.bf16.mxu0 0
        %1740 = vmatpush1.bf16.msra.mxu0 0
        %1741 = vmatprep.subr.bf16.mxu0 0
        %1742 = vmatpush1.bf16.msra.mxu0 0
        %1743 = vmatprep.subr.bf16.mxu0 0
        %1744 = vmatpush1.bf16.msra.mxu0 0
        %1745 = vmatprep.subr.bf16.mxu0 0
        %1746 = vmatpush1.bf16.msra.mxu0 0
        %1747 = vmatprep.mubr.bf16.mxu0 %v1713
        %1748 = vmatmul.mubr.bf16.gmra.mrb[0].mxu0 %v1655
        %v1749 = vpop.f32.mrb[0].mxu0
        %v1750 = vadd.f32 0.0, %v1749
        %v1751 = vpop.f32.mrb[0].mxu0
        %v1752 = vpop.f32.mrb[0].mxu0
        %v1753 = vpop.f32.mrb[0].mxu0
        %1754 = vdwg.mxu0
        %v1755 = vadd.f32 %v1635, %v1750
        %v1756 = vld [vmem:[%s5] sm:$0x1]
        %v1758 = vlaneseq
        %v1759 = vshrl.u32 %v1758, 7
        %v1760 = vsub.s32 0, %v1759
        %v1761 = vrot.slane %v1756, %v1760
        %v1763 = vadd.f32 %v1755, %v1761
        %v1764 = vpack.c.bf16 %v1763, %v1763
        %v1765 = vtanh.bf16.pop %v1764
        %v1766 = vld [vmem:[#allocation10] sm:$0x3]
        %vm1767 = vcmask 64512
        %v1769 = vsel %vm1767, %v1766, 0
        %v1772 = vsel %vm1092, %v1765, 0
        %1774 = vmatprep.subr.bf16.mxu0 0
        %1775 = vmatpush1.bf16.msra.mxu0 %v1772
        %1776 = vmatprep.subr.bf16.mxu0 0
        %1777 = vmatpush1.bf16.msra.mxu0 0
        %1778 = vmatprep.subr.bf16.mxu0 0
        %1779 = vmatpush1.bf16.msra.mxu0 0
        %1780 = vmatprep.subr.bf16.mxu0 0
        %1781 = vmatpush1.bf16.msra.mxu0 0
        %1782 = vmatprep.subr.bf16.mxu0 0
        %1783 = vmatpush1.bf16.msra.mxu0 0
        %1784 = vmatprep.subr.bf16.mxu0 0
        %1785 = vmatpush1.bf16.msra.mxu0 0
        %1786 = vmatprep.subr.bf16.mxu0 0
        %1787 = vmatpush1.bf16.msra.mxu0 0
        %1788 = vmatprep.subr.bf16.mxu0 0
        %1789 = vmatpush1.bf16.msra.mxu0 0
        %1790 = vmatprep.subr.bf16.mxu0 0
        %1791 = vmatpush1.bf16.msra.mxu0 0
        %1792 = vmatprep.subr.bf16.mxu0 0
        %1793 = vmatpush1.bf16.msra.mxu0 0
        %1794 = vmatprep.subr.bf16.mxu0 0
        %1795 = vmatpush1.bf16.msra.mxu0 0
        %1796 = vmatprep.subr.bf16.mxu0 0
        %1797 = vmatpush1.bf16.msra.mxu0 0
        %1798 = vmatprep.subr.bf16.mxu0 0
        %1799 = vmatpush1.bf16.msra.mxu0 0
        %1800 = vmatprep.subr.bf16.mxu0 0
        %1801 = vmatpush1.bf16.msra.mxu0 0
        %1802 = vmatprep.subr.bf16.mxu0 0
        %1803 = vmatpush1.bf16.msra.mxu0 0
        %1804 = vmatprep.subr.bf16.mxu0 0
        %1805 = vmatpush1.bf16.msra.mxu0 0
        %1806 = vmatprep.mubr.bf16.mxu0 0
        %1807 = vmatmul.mubr.bf16.gmra.mrb[0].mxu0 %v1769
        %v1808 = vpop.f32.mrb[0].mxu0
        %v1809 = vadd.f32 0.0, %v1808
        %v1810 = vpop.f32.mrb[0].mxu0
        %v1811 = vpop.f32.mrb[0].mxu0
        %v1812 = vpop.f32.mrb[0].mxu0
        %1813 = vdwg.mxu0
        %v1814 = vpack.c.bf16 %v1809, %v1809
        %v1815 = vld [vmem:[#allocation11] sm:$0xf]
        %v1816 = vld [vmem:[#allocation11 + $0x4] sm:$0xf]
        %v1817 = vld [vmem:[#allocation11 + $0x8] sm:$0xf]
        %v1818 = vld [vmem:[#allocation11 + $0xc] sm:$0xf]
        %v1819 = vld [vmem:[#allocation11 + $0x10] sm:$0xf]
        %v1820 = vld [vmem:[#allocation11 + $0x14] sm:$0xf]
        %v1821 = vld [vmem:[#allocation11 + $0x18] sm:$0xf]
        %v1822 = vld [vmem:[#allocation11 + $0x1c] sm:$0xf]
        %v1823 = vld [vmem:[#allocation11 + $0x20] sm:$0xf]
        %v1824 = vld [vmem:[#allocation11 + $0x24] sm:$0xf]
        %v1825 = vld [vmem:[#allocation11 + $0x28] sm:$0xf]
        %v1826 = vld [vmem:[#allocation11 + $0x2c] sm:$0xf]
        %v1827 = vld [vmem:[#allocation11 + $0x30] sm:$0xf]
        %v1828 = vld [vmem:[#allocation11 + $0x34] sm:$0xf]
        %v1829 = vld [vmem:[#allocation11 + $0x38] sm:$0xf]
        %v1830 = vld [vmem:[#allocation11 + $0x3c] sm:$0xf]
        %s1831 = scalar_lea.vmem [#allocation11], 64
        %v1832 = vld [vmem:[%s1831] sm:$0xf]
        %v1833 = vld [vmem:[%s1831 + $0x4] sm:$0xf]
        %v1834 = vld [vmem:[%s1831 + $0x8] sm:$0xf]
        %v1835 = vld [vmem:[%s1831 + $0xc] sm:$0xf]
        %v1836 = vld [vmem:[%s1831 + $0x10] sm:$0xf]
        %v1837 = vld [vmem:[%s1831 + $0x14] sm:$0xf]
        %v1838 = vld [vmem:[%s1831 + $0x18] sm:$0xf]
        %v1839 = vld [vmem:[%s1831 + $0x1c] sm:$0xf]
        %v1840 = vld [vmem:[%s1831 + $0x20] sm:$0xf]
        %v1841 = vld [vmem:[%s1831 + $0x24] sm:$0xf]
        %v1842 = vld [vmem:[%s1831 + $0x28] sm:$0xf]
        %v1843 = vld [vmem:[%s1831 + $0x2c] sm:$0xf]
        %v1844 = vld [vmem:[%s1831 + $0x30] sm:$0xf]
        %v1845 = vld [vmem:[%s1831 + $0x34] sm:$0xf]
        %v1846 = vld [vmem:[%s1831 + $0x38] sm:$0xf]
        %v1847 = vld [vmem:[%s1831 + $0x3c] sm:$0xf]
        %v1849 = vshrl.u32 %v1814, 16
        %v1868 = vunpack.c.l.b16 %v1832
        %v1869 = vunpack.c.l.b16 %v1833
        %v1870 = vunpack.c.l.b16 %v1834
        %v1871 = vunpack.c.l.b16 %v1835
        %v1872 = vunpack.c.l.b16 %v1836
        %v1873 = vunpack.c.l.b16 %v1837
        %v1874 = vunpack.c.l.b16 %v1838
        %v1875 = vunpack.c.l.b16 %v1839
        %v1876 = vunpack.c.l.b16 %v1840
        %v1877 = vunpack.c.l.b16 %v1841
        %v1878 = vunpack.c.l.b16 %v1842
        %v1879 = vunpack.c.l.b16 %v1843
        %v1880 = vunpack.c.l.b16 %v1844
        %v1881 = vunpack.c.l.b16 %v1845
        %v1882 = vunpack.c.l.b16 %v1846
        %v1883 = vunpack.c.l.b16 %v1847
        %v1884 = vpack.c.b16 %v1869, %v1868
        %v1885 = vpack.c.b16 %v1871, %v1870
        %v1886 = vpack.c.b16 %v1873, %v1872
        %v1887 = vpack.c.b16 %v1875, %v1874
        %v1888 = vpack.c.b16 %v1877, %v1876
        %v1889 = vpack.c.b16 %v1879, %v1878
        %v1890 = vpack.c.b16 %v1881, %v1880
        %v1891 = vpack.c.b16 %v1883, %v1882
        %1900 = vmatprep.subr.bf16.mxu0 0
        %1901 = vmatpush1.bf16.msra.mxu0 %v1884
        %1902 = vmatprep.subr.bf16.mxu0 0
        %1903 = vmatpush1.bf16.msra.mxu0 %v1885
        %1904 = vmatprep.subr.bf16.mxu0 0
        %1905 = vmatpush1.bf16.msra.mxu0 %v1886
        %1906 = vmatprep.subr.bf16.mxu0 0
        %1907 = vmatpush1.bf16.msra.mxu0 %v1887
        %1908 = vmatprep.subr.bf16.mxu0 0
        %1909 = vmatpush1.bf16.msra.mxu0 %v1888
        %1910 = vmatprep.subr.bf16.mxu0 0
        %1911 = vmatpush1.bf16.msra.mxu0 %v1889
        %1912 = vmatprep.subr.bf16.mxu0 0
        %1913 = vmatpush1.bf16.msra.mxu0 %v1890
        %1914 = vmatprep.subr.bf16.mxu0 0
        %1915 = vmatpush1.bf16.msra.mxu0 %v1891
        %1916 = vmatprep.subr.bf16.mxu0 0
        %1917 = vmatpush1.bf16.msra.mxu0 0
        %1918 = vmatprep.subr.bf16.mxu0 0
        %1919 = vmatpush1.bf16.msra.mxu0 0
        %1920 = vmatprep.subr.bf16.mxu0 0
        %1921 = vmatpush1.bf16.msra.mxu0 0
        %1922 = vmatprep.subr.bf16.mxu0 0
        %1923 = vmatpush1.bf16.msra.mxu0 0
        %1924 = vmatprep.subr.bf16.mxu0 0
        %1925 = vmatpush1.bf16.msra.mxu0 0
        %1926 = vmatprep.subr.bf16.mxu0 0
        %1927 = vmatpush1.bf16.msra.mxu0 0
        %1928 = vmatprep.subr.bf16.mxu0 0
        %1929 = vmatpush1.bf16.msra.mxu0 0
        %1930 = vmatprep.subr.bf16.mxu0 0
        %1931 = vmatpush1.bf16.msra.mxu0 0
        %1932 = vmatprep.mubr.bf16.mxu0 0
        %1933 = vmatmul.mubr.bf16.gmra.mrb[0].mxu0 %v1849
        %v1934 = vpop.f32.mrb[0].mxu0
        %v1935 = vadd.f32 0.0, %v1934
        %v1936 = vpop.f32.mrb[0].mxu0
        %v1937 = vpop.f32.mrb[0].mxu0
        %v1938 = vpop.f32.mrb[0].mxu0
        %1939 = vdwg.mxu0
        %v1956 = vunpack.c.l.b16 %v1815
        %v1957 = vunpack.c.l.b16 %v1816
        %v1958 = vunpack.c.l.b16 %v1817
        %v1959 = vunpack.c.l.b16 %v1818
        %v1960 = vunpack.c.l.b16 %v1819
        %v1961 = vunpack.c.l.b16 %v1820
        %v1962 = vunpack.c.l.b16 %v1821
        %v1963 = vunpack.c.l.b16 %v1822
        %v1964 = vunpack.c.l.b16 %v1823
        %v1965 = vunpack.c.l.b16 %v1824
        %v1966 = vunpack.c.l.b16 %v1825
        %v1967 = vunpack.c.l.b16 %v1826
        %v1968 = vunpack.c.l.b16 %v1827
        %v1969 = vunpack.c.l.b16 %v1828
        %v1970 = vunpack.c.l.b16 %v1829
        %v1971 = vunpack.c.l.b16 %v1830
        %v1972 = vpack.c.b16 %v1957, %v1956
        %v1973 = vpack.c.b16 %v1959, %v1958
        %v1974 = vpack.c.b16 %v1961, %v1960
        %v1975 = vpack.c.b16 %v1963, %v1962
        %v1976 = vpack.c.b16 %v1965, %v1964
        %v1977 = vpack.c.b16 %v1967, %v1966
        %v1978 = vpack.c.b16 %v1969, %v1968
        %v1979 = vpack.c.b16 %v1971, %v1970
        %1988 = vmatprep.subr.bf16.mxu0 0
        %1989 = vmatpush1.bf16.msra.mxu0 %v1972
        %1990 = vmatprep.subr.bf16.mxu0 0
        %1991 = vmatpush1.bf16.msra.mxu0 %v1973
        %1992 = vmatprep.subr.bf16.mxu0 0
        %1993 = vmatpush1.bf16.msra.mxu0 %v1974
        %1994 = vmatprep.subr.bf16.mxu0 0
        %1995 = vmatpush1.bf16.msra.mxu0 %v1975
        %1996 = vmatprep.subr.bf16.mxu0 0
        %1997 = vmatpush1.bf16.msra.mxu0 %v1976
        %1998 = vmatprep.subr.bf16.mxu0 0
        %1999 = vmatpush1.bf16.msra.mxu0 %v1977
        %2000 = vmatprep.subr.bf16.mxu0 0
        %2001 = vmatpush1.bf16.msra.mxu0 %v1978
        %2002 = vmatprep.subr.bf16.mxu0 0
        %2003 = vmatpush1.bf16.msra.mxu0 %v1979
        %2004 = vmatprep.subr.bf16.mxu0 0
        %2005 = vmatpush1.bf16.msra.mxu0 0
        %2006 = vmatprep.subr.bf16.mxu0 0
        %2007 = vmatpush1.bf16.msra.mxu0 0
        %2008 = vmatprep.subr.bf16.mxu0 0
        %2009 = vmatpush1.bf16.msra.mxu0 0
        %2010 = vmatprep.subr.bf16.mxu0 0
        %2011 = vmatpush1.bf16.msra.mxu0 0
        %2012 = vmatprep.subr.bf16.mxu0 0
        %2013 = vmatpush1.bf16.msra.mxu0 0
        %2014 = vmatprep.subr.bf16.mxu0 0
        %2015 = vmatpush1.bf16.msra.mxu0 0
        %2016 = vmatprep.subr.bf16.mxu0 0
        %2017 = vmatpush1.bf16.msra.mxu0 0
        %2018 = vmatprep.subr.bf16.mxu0 0
        %2019 = vmatpush1.bf16.msra.mxu0 0
        %2020 = vmatprep.mubr.bf16.mxu0 0
        %2021 = vmatmul.mubr.bf16.gmra.mrb[0].mxu0 %v1814
        %v2022 = vpop.f32.mrb[0].mxu0
        %v2023 = vadd.f32 %v1935, %v2022
        %v2024 = vpop.f32.mrb[0].mxu0
        %v2025 = vpop.f32.mrb[0].mxu0
        %v2026 = vpop.f32.mrb[0].mxu0
        %2027 = vdwg.mxu0
        %s2028 = scalar_lea.vmem [#allocation11], 128
        %v2029 = vld [vmem:[%s2028] sm:$0xf]
        %v2030 = vld [vmem:[%s2028 + $0x4] sm:$0xf]
        %v2031 = vld [vmem:[%s2028 + $0x8] sm:$0xf]
        %v2032 = vld [vmem:[%s2028 + $0xc] sm:$0xf]
        %v2033 = vld [vmem:[%s2028 + $0x10] sm:$0xf]
        %v2034 = vld [vmem:[%s2028 + $0x14] sm:$0xf]
        %v2035 = vld [vmem:[%s2028 + $0x18] sm:$0xf]
        %v2036 = vld [vmem:[%s2028 + $0x1c] sm:$0xf]
        %v2037 = vld [vmem:[%s2028 + $0x20] sm:$0xf]
        %v2038 = vld [vmem:[%s2028 + $0x24] sm:$0xf]
        %v2039 = vld [vmem:[%s2028 + $0x28] sm:$0xf]
        %v2040 = vld [vmem:[%s2028 + $0x2c] sm:$0xf]
        %v2041 = vld [vmem:[%s2028 + $0x30] sm:$0xf]
        %v2042 = vld [vmem:[%s2028 + $0x34] sm:$0xf]
        %v2043 = vld [vmem:[%s2028 + $0x38] sm:$0xf]
        %v2044 = vld [vmem:[%s2028 + $0x3c] sm:$0xf]
        %v2046 = vrot.slane %v1814, 1
        %v2064 = vunpack.c.l.b16 %v2029
        %v2065 = vunpack.c.l.b16 %v2030
        %v2066 = vunpack.c.l.b16 %v2031
        %v2067 = vunpack.c.l.b16 %v2032
        %v2068 = vunpack.c.l.b16 %v2033
        %v2069 = vunpack.c.l.b16 %v2034
        %v2070 = vunpack.c.l.b16 %v2035
        %v2071 = vunpack.c.l.b16 %v2036
        %v2072 = vunpack.c.l.b16 %v2037
        %v2073 = vunpack.c.l.b16 %v2038
        %v2074 = vunpack.c.l.b16 %v2039
        %v2075 = vunpack.c.l.b16 %v2040
        %v2076 = vunpack.c.l.b16 %v2041
        %v2077 = vunpack.c.l.b16 %v2042
        %v2078 = vunpack.c.l.b16 %v2043
        %v2079 = vunpack.c.l.b16 %v2044
        %v2080 = vpack.c.b16 %v2065, %v2064
        %v2081 = vpack.c.b16 %v2067, %v2066
        %v2082 = vpack.c.b16 %v2069, %v2068
        %v2083 = vpack.c.b16 %v2071, %v2070
        %v2084 = vpack.c.b16 %v2073, %v2072
        %v2085 = vpack.c.b16 %v2075, %v2074
        %v2086 = vpack.c.b16 %v2077, %v2076
        %v2087 = vpack.c.b16 %v2079, %v2078
        %2096 = vmatprep.subr.bf16.mxu0 0
        %2097 = vmatpush1.bf16.msra.mxu0 %v2080
        %2098 = vmatprep.subr.bf16.mxu0 0
        %2099 = vmatpush1.bf16.msra.mxu0 %v2081
        %2100 = vmatprep.subr.bf16.mxu0 0
        %2101 = vmatpush1.bf16.msra.mxu0 %v2082
        %2102 = vmatprep.subr.bf16.mxu0 0
        %2103 = vmatpush1.bf16.msra.mxu0 %v2083
        %2104 = vmatprep.subr.bf16.mxu0 0
        %2105 = vmatpush1.bf16.msra.mxu0 %v2084
        %2106 = vmatprep.subr.bf16.mxu0 0
        %2107 = vmatpush1.bf16.msra.mxu0 %v2085
        %2108 = vmatprep.subr.bf16.mxu0 0
        %2109 = vmatpush1.bf16.msra.mxu0 %v2086
        %2110 = vmatprep.subr.bf16.mxu0 0
        %2111 = vmatpush1.bf16.msra.mxu0 %v2087
        %2112 = vmatprep.subr.bf16.mxu0 0
        %2113 = vmatpush1.bf16.msra.mxu0 0
        %2114 = vmatprep.subr.bf16.mxu0 0
        %2115 = vmatpush1.bf16.msra.mxu0 0
        %2116 = vmatprep.subr.bf16.mxu0 0
        %2117 = vmatpush1.bf16.msra.mxu0 0
        %2118 = vmatprep.subr.bf16.mxu0 0
        %2119 = vmatpush1.bf16.msra.mxu0 0
        %2120 = vmatprep.subr.bf16.mxu0 0
        %2121 = vmatpush1.bf16.msra.mxu0 0
        %2122 = vmatprep.subr.bf16.mxu0 0
        %2123 = vmatpush1.bf16.msra.mxu0 0
        %2124 = vmatprep.subr.bf16.mxu0 0
        %2125 = vmatpush1.bf16.msra.mxu0 0
        %2126 = vmatprep.subr.bf16.mxu0 0
        %2127 = vmatpush1.bf16.msra.mxu0 0
        %2128 = vmatprep.mubr.bf16.mxu0 0
        %2129 = vmatmul.mubr.bf16.gmra.mrb[0].mxu0 %v2046
        %v2130 = vpop.f32.mrb[0].mxu0
        %v2131 = vadd.f32 0.0, %v2130
        %v2132 = vpop.f32.mrb[0].mxu0
        %v2133 = vpop.f32.mrb[0].mxu0
        %v2134 = vpop.f32.mrb[0].mxu0
        %2135 = vdwg.mxu0
        %v2136 = vadd.f32 %v2023, %v2131
        %s2137 = scalar_lea.vmem [#allocation11], 192
        %v2138 = vld [vmem:[%s2137] sm:$0xf]
        %v2139 = vld [vmem:[%s2137 + $0x4] sm:$0xf]
        %v2140 = vld [vmem:[%s2137 + $0x8] sm:$0xf]
        %v2141 = vld [vmem:[%s2137 + $0xc] sm:$0xf]
        %v2142 = vld [vmem:[%s2137 + $0x10] sm:$0xf]
        %v2143 = vld [vmem:[%s2137 + $0x14] sm:$0xf]
        %v2144 = vld [vmem:[%s2137 + $0x18] sm:$0xf]
        %v2145 = vld [vmem:[%s2137 + $0x1c] sm:$0xf]
        %v2146 = vld [vmem:[%s2137 + $0x20] sm:$0xf]
        %v2147 = vld [vmem:[%s2137 + $0x24] sm:$0xf]
        %v2148 = vld [vmem:[%s2137 + $0x28] sm:$0xf]
        %v2149 = vld [vmem:[%s2137 + $0x2c] sm:$0xf]
        %v2150 = vld [vmem:[%s2137 + $0x30] sm:$0xf]
        %v2151 = vld [vmem:[%s2137 + $0x34] sm:$0xf]
        %v2152 = vld [vmem:[%s2137 + $0x38] sm:$0xf]
        %v2153 = vld [vmem:[%s2137 + $0x3c] sm:$0xf]
        %v2154 = vrot.slane %v1849, 1
        %v2172 = vunpack.c.l.b16 %v2138
        %v2173 = vunpack.c.l.b16 %v2139
        %v2174 = vunpack.c.l.b16 %v2140
        %v2175 = vunpack.c.l.b16 %v2141
        %v2176 = vunpack.c.l.b16 %v2142
        %v2177 = vunpack.c.l.b16 %v2143
        %v2178 = vunpack.c.l.b16 %v2144
        %v2179 = vunpack.c.l.b16 %v2145
        %v2180 = vunpack.c.l.b16 %v2146
        %v2181 = vunpack.c.l.b16 %v2147
        %v2182 = vunpack.c.l.b16 %v2148
        %v2183 = vunpack.c.l.b16 %v2149
        %v2184 = vunpack.c.l.b16 %v2150
        %v2185 = vunpack.c.l.b16 %v2151
        %v2186 = vunpack.c.l.b16 %v2152
        %v2187 = vunpack.c.l.b16 %v2153
        %v2188 = vpack.c.b16 %v2173, %v2172
        %v2189 = vpack.c.b16 %v2175, %v2174
        %v2190 = vpack.c.b16 %v2177, %v2176
        %v2191 = vpack.c.b16 %v2179, %v2178
        %v2192 = vpack.c.b16 %v2181, %v2180
        %v2193 = vpack.c.b16 %v2183, %v2182
        %v2194 = vpack.c.b16 %v2185, %v2184
        %v2195 = vpack.c.b16 %v2187, %v2186
        %2204 = vmatprep.subr.bf16.mxu0 0
        %2205 = vmatpush1.bf16.msra.mxu0 %v2188
        %2206 = vmatprep.subr.bf16.mxu0 0
        %2207 = vmatpush1.bf16.msra.mxu0 %v2189
        %2208 = vmatprep.subr.bf16.mxu0 0
        %2209 = vmatpush1.bf16.msra.mxu0 %v2190
        %2210 = vmatprep.subr.bf16.mxu0 0
        %2211 = vmatpush1.bf16.msra.mxu0 %v2191
        %2212 = vmatprep.subr.bf16.mxu0 0
        %2213 = vmatpush1.bf16.msra.mxu0 %v2192
        %2214 = vmatprep.subr.bf16.mxu0 0
        %2215 = vmatpush1.bf16.msra.mxu0 %v2193
        %2216 = vmatprep.subr.bf16.mxu0 0
        %2217 = vmatpush1.bf16.msra.mxu0 %v2194
        %2218 = vmatprep.subr.bf16.mxu0 0
        %2219 = vmatpush1.bf16.msra.mxu0 %v2195
        %2220 = vmatprep.subr.bf16.mxu0 0
        %2221 = vmatpush1.bf16.msra.mxu0 0
        %2222 = vmatprep.subr.bf16.mxu0 0
        %2223 = vmatpush1.bf16.msra.mxu0 0
        %2224 = vmatprep.subr.bf16.mxu0 0
        %2225 = vmatpush1.bf16.msra.mxu0 0
        %2226 = vmatprep.subr.bf16.mxu0 0
        %2227 = vmatpush1.bf16.msra.mxu0 0
        %2228 = vmatprep.subr.bf16.mxu0 0
        %2229 = vmatpush1.bf16.msra.mxu0 0
        %2230 = vmatprep.subr.bf16.mxu0 0
        %2231 = vmatpush1.bf16.msra.mxu0 0
        %2232 = vmatprep.subr.bf16.mxu0 0
        %2233 = vmatpush1.bf16.msra.mxu0 0
        %2234 = vmatprep.subr.bf16.mxu0 0
        %2235 = vmatpush1.bf16.msra.mxu0 0
        %2236 = vmatprep.mubr.bf16.mxu0 0
        %2237 = vmatmul.mubr.bf16.gmra.mrb[0].mxu0 %v2154
        %v2238 = vpop.f32.mrb[0].mxu0
        %v2239 = vadd.f32 0.0, %v2238
        %v2240 = vpop.f32.mrb[0].mxu0
        %v2241 = vpop.f32.mrb[0].mxu0
        %v2242 = vpop.f32.mrb[0].mxu0
        %2243 = vdwg.mxu0
        %v2244 = vadd.f32 %v2136, %v2239
        %v2245 = vld [vmem:[#allocation13] sm:$0x1]
        %v2246 = vadd.f32 %v2244, %v2245
        %v2247 = vpack.c.bf16 %v2246, %v2246
        %v2248 = vtanh.bf16.pop %v2247
        %v2249 = vld [vmem:[%s9] sm:$0xf]
        %v2250 = vld [vmem:[%s9 + $0x4] sm:$0xf]
        %v2251 = vld [vmem:[%s9 + $0x8] sm:$0xf]
        %v2252 = vld [vmem:[%s9 + $0xc] sm:$0xf]
        %v2253 = vld [vmem:[%s9 + $0x10] sm:$0xf]
        %v2254 = vld [vmem:[%s9 + $0x14] sm:$0xf]
        %v2255 = vld [vmem:[%s9 + $0x18] sm:$0xf]
        %v2256 = vld [vmem:[%s9 + $0x1c] sm:$0xf]
        %v2257 = vld [vmem:[%s9 + $0x20] sm:$0xf]
        %v2258 = vld [vmem:[%s9 + $0x24] sm:$0xf]
        %v2259 = vld [vmem:[%s9 + $0x28] sm:$0xf]
        %v2260 = vld [vmem:[%s9 + $0x2c] sm:$0xf]
        %v2261 = vld [vmem:[%s9 + $0x30] sm:$0xf]
        %v2262 = vld [vmem:[%s9 + $0x34] sm:$0xf]
        %v2263 = vld [vmem:[%s9 + $0x38] sm:$0xf]
        %v2264 = vld [vmem:[%s9 + $0x3c] sm:$0xf]
        %v2265 = vld [vmem:[#allocation14] sm:$0x1]
        %v2282 = vunpack.c.l.b16 %v2249
        %v2283 = vunpack.c.l.b16 %v2250
        %v2284 = vunpack.c.l.b16 %v2251
        %v2285 = vunpack.c.l.b16 %v2252
        %v2286 = vunpack.c.l.b16 %v2253
        %v2287 = vunpack.c.l.b16 %v2254
        %v2288 = vunpack.c.l.b16 %v2255
        %v2289 = vunpack.c.l.b16 %v2256
        %v2290 = vunpack.c.l.b16 %v2257
        %v2291 = vunpack.c.l.b16 %v2258
        %v2292 = vunpack.c.l.b16 %v2259
        %v2293 = vunpack.c.l.b16 %v2260
        %v2294 = vunpack.c.l.b16 %v2261
        %v2295 = vunpack.c.l.b16 %v2262
        %v2296 = vunpack.c.l.b16 %v2263
        %v2297 = vunpack.c.l.b16 %v2264
        %v2298 = vpack.c.b16 %v2283, %v2282
        %v2299 = vpack.c.b16 %v2285, %v2284
        %v2300 = vpack.c.b16 %v2287, %v2286
        %v2301 = vpack.c.b16 %v2289, %v2288
        %v2302 = vpack.c.b16 %v2291, %v2290
        %v2303 = vpack.c.b16 %v2293, %v2292
        %v2304 = vpack.c.b16 %v2295, %v2294
        %v2305 = vpack.c.b16 %v2297, %v2296
        %2314 = vmatprep.subr.bf16.mxu0 0
        %2315 = vmatpush1.bf16.msra.mxu0 %v2298
        %2316 = vmatprep.subr.bf16.mxu0 0
        %2317 = vmatpush1.bf16.msra.mxu0 %v2299
        %2318 = vmatprep.subr.bf16.mxu0 0
        %2319 = vmatpush1.bf16.msra.mxu0 %v2300
        %2320 = vmatprep.subr.bf16.mxu0 0
        %2321 = vmatpush1.bf16.msra.mxu0 %v2301
        %2322 = vmatprep.subr.bf16.mxu0 0
        %2323 = vmatpush1.bf16.msra.mxu0 %v2302
        %2324 = vmatprep.subr.bf16.mxu0 0
        %2325 = vmatpush1.bf16.msra.mxu0 %v2303
        %2326 = vmatprep.subr.bf16.mxu0 0
        %2327 = vmatpush1.bf16.msra.mxu0 %v2304
        %2328 = vmatprep.subr.bf16.mxu0 0
        %2329 = vmatpush1.bf16.msra.mxu0 %v2305
        %2330 = vmatprep.subr.bf16.mxu0 0
        %2331 = vmatpush1.bf16.msra.mxu0 0
        %2332 = vmatprep.subr.bf16.mxu0 0
        %2333 = vmatpush1.bf16.msra.mxu0 0
        %2334 = vmatprep.subr.bf16.mxu0 0
        %2335 = vmatpush1.bf16.msra.mxu0 0
        %2336 = vmatprep.subr.bf16.mxu0 0
        %2337 = vmatpush1.bf16.msra.mxu0 0
        %2338 = vmatprep.subr.bf16.mxu0 0
        %2339 = vmatpush1.bf16.msra.mxu0 0
        %2340 = vmatprep.subr.bf16.mxu0 0
        %2341 = vmatpush1.bf16.msra.mxu0 0
        %2342 = vmatprep.subr.bf16.mxu0 0
        %2343 = vmatpush1.bf16.msra.mxu0 0
        %2344 = vmatprep.subr.bf16.mxu0 0
        %2345 = vmatpush1.bf16.msra.mxu0 0
        %2346 = vmatprep.mubr.bf16.mxu0 0
        %2347 = vmatmul.mubr.bf16.gmra.mrb[0].mxu0 %v2248
        %v2348 = vpop.f32.mrb[0].mxu0
        %v2349 = vadd.f32 %v2265, %v2348
        %v2350 = vpop.f32.mrb[0].mxu0
        %v2351 = vpop.f32.mrb[0].mxu0
        %v2352 = vpop.f32.mrb[0].mxu0
        %2353 = vdwg.mxu0
        %v2354 = vpack.c.bf16 %v2349, %v2349
        %v2355 = vmax.bf16 %v2354, 0
        %v2356 = vld [vmem:[%s11] sm:$0xf]
        %v2357 = vld [vmem:[%s11 + $0x4] sm:$0xf]
        %v2358 = vld [vmem:[%s11 + $0x8] sm:$0xf]
        %v2359 = vld [vmem:[%s11 + $0xc] sm:$0xf]
        %v2360 = vld [vmem:[%s11 + $0x10] sm:$0xf]
        %v2361 = vld [vmem:[%s11 + $0x14] sm:$0xf]
        %v2362 = vld [vmem:[%s11 + $0x18] sm:$0xf]
        %v2363 = vld [vmem:[%s11 + $0x1c] sm:$0xf]
        %v2364 = vld [vmem:[%s11 + $0x20] sm:$0xf]
        %v2365 = vld [vmem:[%s11 + $0x24] sm:$0xf]
        %v2366 = vld [vmem:[%s11 + $0x28] sm:$0xf]
        %v2367 = vld [vmem:[%s11 + $0x2c] sm:$0xf]
        %v2368 = vld [vmem:[%s11 + $0x30] sm:$0xf]
        %v2369 = vld [vmem:[%s11 + $0x34] sm:$0xf]
        %v2370 = vld [vmem:[%s11 + $0x38] sm:$0xf]
        %v2371 = vld [vmem:[%s11 + $0x3c] sm:$0xf]
        %v2372 = vld [vmem:[#allocation16] sm:$0x1]
        %v2389 = vunpack.c.l.b16 %v2356
        %v2390 = vunpack.c.l.b16 %v2357
        %v2391 = vunpack.c.l.b16 %v2358
        %v2392 = vunpack.c.l.b16 %v2359
        %v2393 = vunpack.c.l.b16 %v2360
        %v2394 = vunpack.c.l.b16 %v2361
        %v2395 = vunpack.c.l.b16 %v2362
        %v2396 = vunpack.c.l.b16 %v2363
        %v2397 = vunpack.c.l.b16 %v2364
        %v2398 = vunpack.c.l.b16 %v2365
        %v2399 = vunpack.c.l.b16 %v2366
        %v2400 = vunpack.c.l.b16 %v2367
        %v2401 = vunpack.c.l.b16 %v2368
        %v2402 = vunpack.c.l.b16 %v2369
        %v2403 = vunpack.c.l.b16 %v2370
        %v2404 = vunpack.c.l.b16 %v2371
        %v2405 = vpack.c.b16 %v2390, %v2389
        %v2406 = vpack.c.b16 %v2392, %v2391
        %v2407 = vpack.c.b16 %v2394, %v2393
        %v2408 = vpack.c.b16 %v2396, %v2395
        %v2409 = vpack.c.b16 %v2398, %v2397
        %v2410 = vpack.c.b16 %v2400, %v2399
        %v2411 = vpack.c.b16 %v2402, %v2401
        %v2412 = vpack.c.b16 %v2404, %v2403
        %2421 = vmatprep.subr.bf16.mxu0 0
        %2422 = vmatpush1.bf16.msra.mxu0 %v2405
        %2423 = vmatprep.subr.bf16.mxu0 0
        %2424 = vmatpush1.bf16.msra.mxu0 %v2406
        %2425 = vmatprep.subr.bf16.mxu0 0
        %2426 = vmatpush1.bf16.msra.mxu0 %v2407
        %2427 = vmatprep.subr.bf16.mxu0 0
        %2428 = vmatpush1.bf16.msra.mxu0 %v2408
        %2429 = vmatprep.subr.bf16.mxu0 0
        %2430 = vmatpush1.bf16.msra.mxu0 %v2409
        %2431 = vmatprep.subr.bf16.mxu0 0
        %2432 = vmatpush1.bf16.msra.mxu0 %v2410
        %2433 = vmatprep.subr.bf16.mxu0 0
        %2434 = vmatpush1.bf16.msra.mxu0 %v2411
        %2435 = vmatprep.subr.bf16.mxu0 0
        %2436 = vmatpush1.bf16.msra.mxu0 %v2412
        %2437 = vmatprep.subr.bf16.mxu0 0
        %2438 = vmatpush1.bf16.msra.mxu0 0
        %2439 = vmatprep.subr.bf16.mxu0 0
        %2440 = vmatpush1.bf16.msra.mxu0 0
        %2441 = vmatprep.subr.bf16.mxu0 0
        %2442 = vmatpush1.bf16.msra.mxu0 0
        %2443 = vmatprep.subr.bf16.mxu0 0
        %2444 = vmatpush1.bf16.msra.mxu0 0
        %2445 = vmatprep.subr.bf16.mxu0 0
        %2446 = vmatpush1.bf16.msra.mxu0 0
        %2447 = vmatprep.subr.bf16.mxu0 0
        %2448 = vmatpush1.bf16.msra.mxu0 0
        %2449 = vmatprep.subr.bf16.mxu0 0
        %2450 = vmatpush1.bf16.msra.mxu0 0
        %2451 = vmatprep.subr.bf16.mxu0 0
        %2452 = vmatpush1.bf16.msra.mxu0 0
        %2453 = vmatprep.mubr.bf16.mxu0 0
        %2454 = vmatmul.mubr.bf16.gmra.mrb[0].mxu0 %v2355
        %v2455 = vpop.f32.mrb[0].mxu0
        %v2456 = vadd.f32 %v2372, %v2455
        %v2457 = vpop.f32.mrb[0].mxu0
        %v2458 = vpop.f32.mrb[0].mxu0
        %v2459 = vpop.f32.mrb[0].mxu0
        %2460 = vdwg.mxu0
        %v2461 = vmax.f32 %v2456, 0.0
        %2462 = vst [vmem:[%s553] sm:$0x1] %v2461
        %s2463 = sand.u32 %s318, 1
        %s2464 = scalar_lea.sflag [#allocation4], %s2463
        %s2465 = sand.u32 %s318, 1
        %s2466 = scalar_lea.vmem [#allocation17], %s2465
        // Predicated region
        $region109: #{lenet5_forward.1} parent=71 // pred_check
          %p2467 = pneg %p328
        $region110: #{lenet5_forward.1} parent=71 // pred_check_branch
          %2469 = sbr.rel (%p2467) target = $region112
        $region111: #{lenet5_forward.1} parent=71 // pred_region
          %s2471 = ssub.s32 16, 16
          %2472 = vsyncadd %s2464, %s2471
          %s2473 = smul.addr %s32, 16
          %s2474 = scalar_lea.hbm %s13, %s2473
          %s2476 = sshll.u32 %s2466, 4
          %s2477 = int_to_ptr.vmem [resolvable:$true] %s2476
          %2479 = dma.vmem_to_hbm [thread:$0]  %s2477, 16, %s2474, %s2464
        $region112: #{lenet5_forward.1} parent=71 // pred_fallthru
          _
      $region72: #{lenet5_forward.1} parent=5 // pred_fallthru
        _
      %p2480 = scmp.le.s32.totalorder 2, %s27
      // Predicated region
      $region113: #{lenet5_forward.1} parent=5 // pred_check
        %p2481 = pneg %p2480
      $region114: #{lenet5_forward.1} parent=5 // pred_check_branch
        %2483 = sbr.rel (%p2481) target = $region116
      $region115: #{lenet5_forward.1} parent=5 // pred_region
        %s2484 = ssub.s32 %s27, 2
        // Predicated region
        $region117: #{lenet5_forward.1} parent=115 // pred_check
          %p2485 = pneg %p334
        $region118: #{lenet5_forward.1} parent=115 // pred_check_branch
          %2487 = sbr.rel (%p2485) target = $region120
        $region119: #{lenet5_forward.1} parent=115 // pred_region
          %s2488 = sand.u32 %s319, 1
          %s2489 = scalar_lea.sflag [#allocation4], %s2488
          %s2490 = sand.u32 %s319, 1
          %s2491 = scalar_lea.vmem [#allocation17], %s2490
          %2492 = dma.done %s2489, 16
        $region120: #{lenet5_forward.1} parent=115 // pred_fallthru
          _
      $region116: #{lenet5_forward.1} parent=5 // pred_fallthru
        _
    $region6: #{lenet5_forward.1} parent=1 // loop_footer
      %s31 = sadd.s32 1, %s27
    $region7: #{lenet5_forward.1} parent=1 // loop_footer_branch
      %26 = sbr.rel target = $region3
    $region8: #{lenet5_forward.1} parent=1 // loop_exit
      _
    %2493 = vsyncpa [#allocation3], 1
    %s2494 = scalar_lea.sflag [#allocation3], 1
    %2495 = vsyncpa %s2494, 1
    %2496 = vsyncpa [#allocation6], 1
    %2497 = vsyncpa [#allocation9], 1
    %2498 = vsyncpa [#allocation12], 1
    %2499 = vsyncpa [#allocation15], 1
    %2500 = vsyncpa [#allocation4], 1
    %s2501 = scalar_lea.sflag [#allocation4], 1
    %2502 = vsyncpa %s2501, 1

</llo_original>
